<compile_context>
chip_gen: v7x
topology: tpu7x:2x2x1
jax: 0.10.0
libtpu: 0.0.40
codegen_flags: <defaults>
</compile_context>

<pallas_src>
import functools

import jax
import jax.numpy as jnp
from jax import lax
from jax.experimental import pallas as pl
from jax.experimental.pallas import tpu as pltpu

_LANE = 128
_SUBLANE = 8


def _round_up(x, m):
    return (x + m - 1) // m * m


def _vmem_tile_bytes(shape, itemsize):
    """Approximate VMEM footprint of an array once stored in (8,128) tiles."""
    if len(shape) == 1:
        return _round_up(shape[0] * itemsize, _SUBLANE * _LANE * itemsize)
    lead = 1
    for d in shape[:-2]:
        lead *= d
    return (lead * _round_up(shape[-2], _SUBLANE)
            * _round_up(shape[-1], _LANE) * itemsize)


def _lstm_kernel(T, Tb, Bb, Hq,
                 x_ref,      # (Tb*Bb, I)   pre-flattened time-major block (pipelined)
                 wih_ref,    # (I,  4*Hq)   W_ih^T, gates packed [i|f|g|o]
                 whh_ref,    # (Hq, 4*Hq)   W_hh^T
                 bias_ref,   # (1,  4*Hq)   b_ih + b_hh (f32)
                 wfc_ref,    # (Hq, OUTP)   fc.weight^T, lane-dense padded
                 bfc_ref,    # (1,  OUTP)   fc.bias, lane-dense padded (f32)
                 out_ref,    # (Bb, OUTP)
                 h_scr,      # VMEM (Bb, Hq) f32, persists across the time grid axis
                 c_scr,      # VMEM (Bb, Hq) f32, persists across the time grid axis
                 gx_scr):    # VMEM (Tb, Bb, 4*Hq) f32, hoisted input projection
    t_blk = pl.program_id(1)
    n_t = pl.num_programs(1)

    # h0 = c0 = 0 (PyTorch default) at the start of every batch block's time sweep.
    @pl.when(t_blk == 0)
    def _():
        h_scr[...] = jnp.zeros_like(h_scr)
        c_scr[...] = jnp.zeros_like(c_scr)

    # ---- Hoisted input projection: ONE large MXU matmul per time block, bias folded
    # in; the DMA'd x buffer is consumed directly (no in-kernel reshape of the input).
    gx = (jnp.dot(x_ref[...], wih_ref[...], preferred_element_type=jnp.float32)
          + bias_ref[...])                                   # (Tb*Bb, 4Hq)
    gx_scr[...] = gx.reshape(Tb, Bb, 4 * Hq)

    h0 = h_scr[...]
    c0 = c_scr[...]
    base = t_blk * Tb

    def step(t, carry, masked):
        h, c = carry
        # Only this small (Bb, Hq) @ (Hq, 4Hq) matmul stays on the serial chain.
        gates = gx_scr[t] + jnp.dot(h.astype(whh_ref.dtype), whh_ref[...],
                                    preferred_element_type=jnp.float32)  # (Bb, 4Hq)
        i_g = jax.nn.sigmoid(gates[:, 0 * Hq:1 * Hq])
        f_g = jax.nn.sigmoid(gates[:, 1 * Hq:2 * Hq])
        g_g = jnp.tanh(gates[:, 2 * Hq:3 * Hq])
        o_g = jax.nn.sigmoid(gates[:, 3 * Hq:4 * Hq])
        c_new = f_g * c + i_g * g_g
        h_new = o_g * jnp.tanh(c_new)
        if masked:
            # Skip timesteps that only exist because T was padded up to n_t*Tb.
            valid = (base + t) < T
            h_new = jnp.where(valid, h_new, h)
            c_new = jnp.where(valid, c_new, c)
        return h_new, c_new

    unroll = Tb if Tb <= 8 else 8
    # Masking is only generated when Tb does not divide T (the wrapper prefers a
    # divisor of T, so the common path carries zero per-step selects).
    masked = (T % Tb) != 0
    h_f, c_f = lax.fori_loop(0, Tb, functools.partial(step, masked=masked),
                             (h0, c0), unroll=unroll)

    h_scr[...] = h_f
    c_scr[...] = c_f

    # fc on the last timestep's hidden state, only at the final time block.
    @pl.when(t_blk == n_t - 1)
    def _():
        out_ref[...] = (jnp.dot(h_f.astype(wfc_ref.dtype), wfc_ref[...],
                                preferred_element_type=jnp.float32)
                        + bfc_ref[...]).astype(out_ref.dtype)


def lstm_regressor(x, params, *, compute_dtype=jnp.float32,
                   time_block=None, batch_block=None):
    """Forward pass of LSTMRegressor.  x: (batch, seq, input_size) (batch_first)."""
    w_ih, w_hh, b_ih, b_hh, w_fc, b_fc = (
        params["w_ih"], params["w_hh"], params["b_ih"],
        params["b_hh"], params["w_fc"], params["b_fc"])

    B, T, I = x.shape
    H = w_hh.shape[1]

    # Per-gate width: no pad to 128; only 4*Hq has to be a 128-lane multiple.
    Hq = _round_up(H, 32)
    OUTP = _LANE                                  # lane-dense fc output width

    # Batch blocking: single block by default; pass batch_block (multiple of 8) to
    # split the batch over the leading "parallel" grid axis (both TCs on v7x).
    if batch_block is None:
        Bb = _round_up(max(B, _SUBLANE), _SUBLANE)
    else:
        Bb = _round_up(max(int(batch_block), _SUBLANE), _SUBLANE)
    Bp = _round_up(max(B, _SUBLANE), Bb)
    n_b = Bp // Bb

    x_item = jnp.dtype(compute_dtype).itemsize

    # ---- Generation-aware VMEM budget (v5e/v6e: 128 MiB physical, v7x: 64 MiB).
    try:
        vmem_cap = int(pltpu.get_tpu_info().vmem_capacity_bytes)
    except Exception:
        vmem_cap = 64 * 1024 * 1024
    vmem_limit = min(vmem_cap * 3 // 4, 112 * 1024 * 1024)

    # ---- Time-block size from real (8,128)-tiled footprints: lane-padded I for the
    # double-buffered x block, f32 gx scratch, plus weights / h / c / out overhead.
    fixed_bytes = (
        _vmem_tile_bytes((I, 4 * Hq), x_item)
        + _vmem_tile_bytes((Hq, 4 * Hq), x_item)
        + _vmem_tile_bytes((1, 4 * Hq), 4)
        + _vmem_tile_bytes((Hq, OUTP), x_item)
        + _vmem_tile_bytes((1, OUTP), 4)
        + 2 * _vmem_tile_bytes((Bb, Hq), 4)           # h, c scratch
        + 2 * _vmem_tile_bytes((Bb, OUTP), 4))        # output block
    per_step_bytes = Bb * (2 * _round_up(I, _LANE) * x_item      # x, double-buffered
                           + _round_up(4 * Hq, _LANE) * 4)       # gx scratch (f32)
    if time_block is None:
        budget = int(vmem_limit * 0.6) - fixed_bytes - (2 << 20)
        tb_cap = max(1, min(T, budget // per_step_bytes))
        time_block = tb_cap
        # Prefer a block size that divides T -> no tail masking inside the kernel.
        for cand in range(tb_cap, max(1, tb_cap // 2) - 1, -1):
            if T % cand == 0:
                time_block = cand
                break
    Tb = int(time_block)
    n_t = pl.cdiv(T, Tb)
    T_pad = n_t * Tb

    # ---- Pad & repack parameters (once per call, plain JAX on the XLA side).
    def pad_gatewise(w):      # (4H, X) -> (X, 4*Hq), PyTorch gate order (i,f,g,o)
        w4 = w.reshape(4, H, -1)
        w4 = jnp.pad(w4, ((0, 0), (0, Hq - H), (0, 0)))
        return jnp.transpose(w4, (2, 0, 1)).reshape(-1, 4 * Hq)

    wih_t = pad_gatewise(w_ih).astype(compute_dtype)                     # (I, 4Hq)
    whh_t = jnp.pad(pad_gatewise(w_hh),
                    ((0, Hq - H), (0, 0))).astype(compute_dtype)         # (Hq, 4Hq)
    bias = jnp.pad((b_ih + b_hh).reshape(4, H),
                   ((0, 0), (0, Hq - H))).reshape(1, 4 * Hq).astype(jnp.float32)
    wfc_t = jnp.pad(w_fc.T, ((0, Hq - H), (0, OUTP - 1))).astype(compute_dtype)
    bfc = jnp.pad(b_fc.reshape(1, 1), ((0, 0), (0, OUTP - 1))).astype(jnp.float32)

    # ---- Input layout: (n_b, n_t, Tb*Bb, I), pre-flattened time-major blocks so the
    # kernel's projection matmul consumes each DMA'd buffer as-is.
    x_tm = jnp.transpose(x, (1, 0, 2)).astype(compute_dtype)             # (T, B, I)
    x_tm = jnp.pad(x_tm, ((0, T_pad - T), (0, Bp - B), (0, 0)))          # (T_pad, Bp, I)
    x_blk = x_tm.reshape(n_t, Tb, n_b, Bb, I)
    x_blk = jnp.transpose(x_blk, (2, 0, 1, 3, 4)).reshape(n_b, n_t, Tb * Bb, I)

    kernel = functools.partial(_lstm_kernel, T, Tb, Bb, Hq)
    vmem = pl.BlockSpec(memory_space=pltpu.MemorySpace.VMEM)

    out = pl.pallas_call(
        kernel,
        out_shape=jax.ShapeDtypeStruct((Bp, OUTP), jnp.float32),
        grid_spec=pltpu.PrefetchScalarGridSpec(
            num_scalar_prefetch=0,
            grid=(n_b, n_t),
            in_specs=[
                pl.BlockSpec((None, None, Tb * Bb, I),
                             lambda b, t: (b, t, 0, 0)),   # streamed x blocks
                vmem, vmem, vmem, vmem, vmem,              # weights stay resident
            ],
            out_specs=pl.BlockSpec((Bb, OUTP), lambda b, t: (b, 0)),
            scratch_shapes=[
                pltpu.VMEM((Bb, Hq), jnp.float32),          # h (persists over time)
                pltpu.VMEM((Bb, Hq), jnp.float32),          # c (persists over time)
                pltpu.VMEM((Tb, Bb, 4 * Hq), jnp.float32),  # hoisted gates_x
            ],
        ),
        compiler_params=pltpu.CompilerParams(
            dimension_semantics=("parallel", "arbitrary"),   # batch parallel, time serial
            vmem_limit_bytes=vmem_limit,
        ),
    )(x_blk, wih_t, whh_t, bias, wfc_t, bfc)

    return out[:B, :1].astype(x.dtype)


def _reference_jax(x, params):
    """Pure-JAX reference of the same forward pass (for correctness checks)."""
    w_ih, w_hh, b_ih, b_hh, w_fc, b_fc = (
        params["w_ih"], params["w_hh"], params["b_ih"],
        params["b_hh"], params["w_fc"], params["b_fc"])
    B, T, I = x.shape
    H = w_hh.shape[1]
    h = jnp.zeros((B, H), jnp.float32)
    c = jnp.zeros((B, H), jnp.float32)
    for t in range(T):
        g = x[:, t, :] @ w_ih.T + h @ w_hh.T + b_ih + b_hh
        i = jax.nn.sigmoid(g[:, 0 * H:1 * H])
        f = jax.nn.sigmoid(g[:, 1 * H:2 * H])
        gg = jnp.tanh(g[:, 2 * H:3 * H])
        o = jax.nn.sigmoid(g[:, 3 * H:4 * H])
        c = f * c + i * gg
        h = o * jnp.tanh(c)
    return h @ w_fc.T + b_fc


if __name__ == "__main__":
    # Small, deterministic problem: batch=4, seq=8, input_size=16, hidden=32
    B, T, I, H = 4, 8, 16, 32

    key = jax.random.PRNGKey(0)
    k = jax.random.split(key, 8)
    scale = 1.0 / jnp.sqrt(H)   # PyTorch LSTM init range U(-1/sqrt(H), 1/sqrt(H))

    params = {
        "w_ih": jax.random.uniform(k[0], (4 * H, I), jnp.float32, -scale, scale),
        "w_hh": jax.random.uniform(k[1], (4 * H, H), jnp.float32, -scale, scale),
        "b_ih": jax.random.uniform(k[2], (4 * H,), jnp.float32, -scale, scale),
        "b_hh": jax.random.uniform(k[3], (4 * H,), jnp.float32, -scale, scale),
        "w_fc": jax.random.uniform(k[4], (1, H), jnp.float32, -scale, scale),
        "b_fc": jax.random.uniform(k[5], (1,), jnp.float32, -scale, scale),
    }
    x = jax.random.normal(k[6], (B, T, I), jnp.float32)
    ref = _reference_jax(x, params)

    # 1) Default path: whole sequence in one time block, single batch block.
    out = jax.block_until_ready(lstm_regressor(x, params))
    assert out.shape == (B, 1), out.shape
    assert jnp.allclose(out, ref, atol=1e-5, rtol=1e-5), (out, ref)

    # 2) Multiple time blocks with a ragged tail (Tb=3 over T=8): exercises the
    #    time-grid pipelining, persistent h/c scratch and the masked tail path.
    out2 = jax.block_until_ready(lstm_regressor(x, params, time_block=3))
    assert out2.shape == (B, 1), out2.shape
    assert jnp.allclose(out2, ref, atol=1e-5, rtol=1e-5), (out2, ref)

    # 3) Batch-blocked path (leading "parallel" grid axis, 2 blocks of 8): the
    #    layout that spreads work across both TensorCores on v7x.
    B2 = 12
    x2 = jax.random.normal(k[7], (B2, T, I), jnp.float32)
    ref2 = _reference_jax(x2, params)
    out3 = jax.block_until_ready(lstm_regressor(x2, params, batch_block=8))
    assert out3.shape == (B2, 1), out3.shape
    assert jnp.allclose(out3, ref2, atol=1e-5, rtol=1e-5), (out3, ref2)

    # 4) bf16 weights/activations path (f32 accumulation kept): loose-tolerance
    #    smoke test; exact f32 semantics are asserted in 1-3.
    out4 = jax.block_until_ready(
        lstm_regressor(x, params, compute_dtype=jnp.bfloat16))
    assert out4.shape == (B, 1), out4.shape
    assert jnp.allclose(out4, ref, atol=1e-1, rtol=1e-1), (out4, ref)

    print("KERNEL_OK")
</pallas_src>

<mosaic_0001>
module attributes {stable_mosaic.version = 11 : i64} {
  func.func @_lstm_kernel(%arg0: i32, %arg1: i32, %arg2: memref<1x1x64x16xf32, #tpu.memory_space<vmem>>, %arg3: memref<16x128xf32, #tpu.memory_space<vmem>>, %arg4: memref<32x128xf32, #tpu.memory_space<vmem>>, %arg5: memref<1x128xf32, #tpu.memory_space<vmem>>, %arg6: memref<32x128xf32, #tpu.memory_space<vmem>>, %arg7: memref<1x128xf32, #tpu.memory_space<vmem>>, %arg8: memref<8x128xf32, #tpu.memory_space<vmem>>, %arg9: memref<8x32xf32, #tpu.memory_space<vmem>>, %arg10: memref<8x32xf32, #tpu.memory_space<vmem>>, %arg11: memref<8x8x128xf32, #tpu.memory_space<vmem>>) attributes {dimension_semantics = [#tpu.dimension_semantics<parallel>, #tpu.dimension_semantics<arbitrary>], iteration_bounds = array<i64: 1, 1>, scalar_prefetch = 0 : i64, scratch_operands = 3 : i64, tpu.core_type = #tpu.core_type<tc>, window_params = [{transform_indices = @transform_0, window_bounds = array<i64: 1, 1, 64, 16>}, {pipeline_mode = #tpu.pipeline_mode<synchronous>, transform_indices = @transform_1, window_bounds = array<i64: 16, 128>}, {pipeline_mode = #tpu.pipeline_mode<synchronous>, transform_indices = @transform_2, window_bounds = array<i64: 32, 128>}, {pipeline_mode = #tpu.pipeline_mode<synchronous>, transform_indices = @transform_3, window_bounds = array<i64: 1, 128>}, {pipeline_mode = #tpu.pipeline_mode<synchronous>, transform_indices = @transform_4, window_bounds = array<i64: 32, 128>}, {pipeline_mode = #tpu.pipeline_mode<synchronous>, transform_indices = @transform_5, window_bounds = array<i64: 1, 128>}, {transform_indices = @transform_6, window_bounds = array<i64: 8, 128>}]} {
    %c0_i32 = arith.constant 0 : i32
    %0 = arith.cmpi eq, %arg1, %c0_i32 : i32
    %1 = arith.extui %0 : i1 to i32
    %c0_i32_0 = arith.constant 0 : i32
    %2 = arith.cmpi ne, %1, %c0_i32_0 : i32
    scf.if %2 {
      %cst_86 = arith.constant 0.000000e+00 : f32
      %267 = vector.broadcast %cst_86 : f32 to vector<8x32xf32>
      %c0_87 = arith.constant 0 : index
      %c0_88 = arith.constant 0 : index
      %268 = vector.load %arg9[%c0_87, %c0_88] : memref<8x32xf32, #tpu.memory_space<vmem>>, vector<8x32xf32>
      tpu.vector_store %arg9[%c0_87, %c0_88], %267 {strides = array<i32>} : memref<8x32xf32, #tpu.memory_space<vmem>>, vector<8x32xf32>,
      %cst_89 = arith.constant 0.000000e+00 : f32
      %269 = vector.broadcast %cst_89 : f32 to vector<8x32xf32>
      %c0_90 = arith.constant 0 : index
      %c0_91 = arith.constant 0 : index
      %270 = vector.load %arg10[%c0_90, %c0_91] : memref<8x32xf32, #tpu.memory_space<vmem>>, vector<8x32xf32>
      tpu.vector_store %arg10[%c0_90, %c0_91], %269 {strides = array<i32>} : memref<8x32xf32, #tpu.memory_space<vmem>>, vector<8x32xf32>,
    } else {
    }
    %c0 = arith.constant 0 : index
    %c0_1 = arith.constant 0 : index
    %c0_2 = arith.constant 0 : index
    %c0_3 = arith.constant 0 : index
    %3 = vector.load %arg2[%c0, %c0_1, %c0_2, %c0_3] : memref<1x1x64x16xf32, #tpu.memory_space<vmem>>, vector<1x1x64x16xf32>
    %4 = vector.shape_cast %3 : vector<1x1x64x16xf32> to vector<64x16xf32>
    %c0_4 = arith.constant 0 : index
    %c0_5 = arith.constant 0 : index
    %5 = vector.load %arg3[%c0_4, %c0_5] : memref<16x128xf32, #tpu.memory_space<vmem>>, vector<16x128xf32>
    %cst = arith.constant dense<0.000000e+00> : vector<64x128xf32>
    %6 = tpu.matmul %4, %5, %cst {dimension_numbers = #tpu.dot_dimension_numbers<[1], [0], [0], [1], [0, 0, 1, 1], [], []>} : vector<64x16xf32>, vector<16x128xf32>, vector<64x128xf32> -> vector<64x128xf32>
    %c0_6 = arith.constant 0 : index
    %c0_7 = arith.constant 0 : index
    %7 = vector.load %arg5[%c0_6, %c0_7] : memref<1x128xf32, #tpu.memory_space<vmem>>, vector<1x128xf32>
    %8 = vector.broadcast %7 : vector<1x128xf32> to vector<64x128xf32>
    %9 = arith.addf %6, %8 : vector<64x128xf32>
    %10 = vector.shape_cast %9 : vector<64x128xf32> to vector<8x8x128xf32>
    %c0_8 = arith.constant 0 : index
    %c0_9 = arith.constant 0 : index
    %c0_10 = arith.constant 0 : index
    %11 = vector.load %arg11[%c0_8, %c0_9, %c0_10] : memref<8x8x128xf32, #tpu.memory_space<vmem>>, vector<8x8x128xf32>
    tpu.vector_store %arg11[%c0_8, %c0_9, %c0_10], %10 {strides = array<i32>} : memref<8x8x128xf32, #tpu.memory_space<vmem>>, vector<8x8x128xf32>,
    %c0_11 = arith.constant 0 : index
    %c0_12 = arith.constant 0 : index
    %12 = vector.load %arg9[%c0_11, %c0_12] : memref<8x32xf32, #tpu.memory_space<vmem>>, vector<8x32xf32>
    %c0_13 = arith.constant 0 : index
    %c0_14 = arith.constant 0 : index
    %13 = vector.load %arg10[%c0_13, %c0_14] : memref<8x32xf32, #tpu.memory_space<vmem>>, vector<8x32xf32>
    %c0_i32_15 = arith.constant 0 : i32
    %14 = arith.index_cast %c0_i32_15 : i32 to index
    %c0_16 = arith.constant 0 : index
    %c0_17 = arith.constant 0 : index
    %15 = vector.load %arg11[%14, %c0_16, %c0_17] : memref<8x8x128xf32, #tpu.memory_space<vmem>>, vector<1x8x128xf32>
    %16 = vector.shape_cast %15 : vector<1x8x128xf32> to vector<8x128xf32>
    %c0_18 = arith.constant 0 : index
    %c0_19 = arith.constant 0 : index
    %17 = vector.load %arg4[%c0_18, %c0_19] : memref<32x128xf32, #tpu.memory_space<vmem>>, vector<32x128xf32>
    %cst_20 = arith.constant dense<0.000000e+00> : vector<8x128xf32>
    %18 = tpu.matmul %12, %17, %cst_20 {dimension_numbers = #tpu.dot_dimension_numbers<[1], [0], [0], [1], [0, 0, 1, 1], [], []>} : vector<8x32xf32>, vector<32x128xf32>, vector<8x128xf32> -> vector<8x128xf32>
    %19 = arith.addf %16, %18 : vector<8x128xf32>
    %20 = vector.extract_strided_slice %19 {offsets = [0, 0], sizes = [8, 32], strides = [1, 1]} : vector<8x128xf32> to vector<8x32xf32>
    %21 = arith.negf %20 : vector<8x32xf32>
    %22 = math.exp %21 : vector<8x32xf32>
    %cst_21 = arith.constant 1.000000e+00 : f32
    %23 = vector.broadcast %cst_21 : f32 to vector<8x32xf32>
    %24 = arith.addf %23, %22 : vector<8x32xf32>
    %25 = arith.divf %23, %24 : vector<8x32xf32>
    %26 = vector.extract_strided_slice %19 {offsets = [0, 32], sizes = [8, 32], strides = [1, 1]} : vector<8x128xf32> to vector<8x32xf32>
    %27 = arith.negf %26 : vector<8x32xf32>
    %28 = math.exp %27 : vector<8x32xf32>
    %cst_22 = arith.constant 1.000000e+00 : f32
    %29 = vector.broadcast %cst_22 : f32 to vector<8x32xf32>
    %30 = arith.addf %29, %28 : vector<8x32xf32>
    %31 = arith.divf %29, %30 : vector<8x32xf32>
    %32 = vector.extract_strided_slice %19 {offsets = [0, 64], sizes = [8, 32], strides = [1, 1]} : vector<8x128xf32> to vector<8x32xf32>
    %33 = math.tanh %32 : vector<8x32xf32>
    %34 = vector.extract_strided_slice %19 {offsets = [0, 96], sizes = [8, 32], strides = [1, 1]} : vector<8x128xf32> to vector<8x32xf32>
    %35 = arith.negf %34 : vector<8x32xf32>
    %36 = math.exp %35 : vector<8x32xf32>
    %cst_23 = arith.constant 1.000000e+00 : f32
    %37 = vector.broadcast %cst_23 : f32 to vector<8x32xf32>
    %38 = arith.addf %37, %36 : vector<8x32xf32>
    %39 = arith.divf %37, %38 : vector<8x32xf32>
    %40 = arith.mulf %31, %13 : vector<8x32xf32>
    %41 = arith.mulf %25, %33 : vector<8x32xf32>
    %42 = arith.addf %40, %41 : vector<8x32xf32>
    %43 = math.tanh %42 : vector<8x32xf32>
    %44 = arith.mulf %39, %43 : vector<8x32xf32>
    %c1_i32 = arith.constant 1 : i32
    %45 = arith.index_cast %c1_i32 : i32 to index
    %c0_24 = arith.constant 0 : index
    %c0_25 = arith.constant 0 : index
    %46 = vector.load %arg11[%45, %c0_24, %c0_25] : memref<8x8x128xf32, #tpu.memory_space<vmem>>, vector<1x8x128xf32>
    %47 = vector.shape_cast %46 : vector<1x8x128xf32> to vector<8x128xf32>
    %c0_26 = arith.constant 0 : index
    %c0_27 = arith.constant 0 : index
    %48 = vector.load %arg4[%c0_26, %c0_27] : memref<32x128xf32, #tpu.memory_space<vmem>>, vector<32x128xf32>
    %cst_28 = arith.constant dense<0.000000e+00> : vector<8x128xf32>
    %49 = tpu.matmul %44, %48, %cst_28 {dimension_numbers = #tpu.dot_dimension_numbers<[1], [0], [0], [1], [0, 0, 1, 1], [], []>} : vector<8x32xf32>, vector<32x128xf32>, vector<8x128xf32> -> vector<8x128xf32>
    %50 = arith.addf %47, %49 : vector<8x128xf32>
    %51 = vector.extract_strided_slice %50 {offsets = [0, 0], sizes = [8, 32], strides = [1, 1]} : vector<8x128xf32> to vector<8x32xf32>
    %52 = arith.negf %51 : vector<8x32xf32>
    %53 = math.exp %52 : vector<8x32xf32>
    %cst_29 = arith.constant 1.000000e+00 : f32
    %54 = vector.broadcast %cst_29 : f32 to vector<8x32xf32>
    %55 = arith.addf %54, %53 : vector<8x32xf32>
    %56 = arith.divf %54, %55 : vector<8x32xf32>
    %57 = vector.extract_strided_slice %50 {offsets = [0, 32], sizes = [8, 32], strides = [1, 1]} : vector<8x128xf32> to vector<8x32xf32>
    %58 = arith.negf %57 : vector<8x32xf32>
    %59 = math.exp %58 : vector<8x32xf32>
    %cst_30 = arith.constant 1.000000e+00 : f32
    %60 = vector.broadcast %cst_30 : f32 to vector<8x32xf32>
    %61 = arith.addf %60, %59 : vector<8x32xf32>
    %62 = arith.divf %60, %61 : vector<8x32xf32>
    %63 = vector.extract_strided_slice %50 {offsets = [0, 64], sizes = [8, 32], strides = [1, 1]} : vector<8x128xf32> to vector<8x32xf32>
    %64 = math.tanh %63 : vector<8x32xf32>
    %65 = vector.extract_strided_slice %50 {offsets = [0, 96], sizes = [8, 32], strides = [1, 1]} : vector<8x128xf32> to vector<8x32xf32>
    %66 = arith.negf %65 : vector<8x32xf32>
    %67 = math.exp %66 : vector<8x32xf32>
    %cst_31 = arith.constant 1.000000e+00 : f32
    %68 = vector.broadcast %cst_31 : f32 to vector<8x32xf32>
    %69 = arith.addf %68, %67 : vector<8x32xf32>
    %70 = arith.divf %68, %69 : vector<8x32xf32>
    %71 = arith.mulf %62, %42 : vector<8x32xf32>
    %72 = arith.mulf %56, %64 : vector<8x32xf32>
    %73 = arith.addf %71, %72 : vector<8x32xf32>
    %74 = math.tanh %73 : vector<8x32xf32>
    %75 = arith.mulf %70, %74 : vector<8x32xf32>
    %c2_i32 = arith.constant 2 : i32
    %76 = arith.index_cast %c2_i32 : i32 to index
    %c0_32 = arith.constant 0 : index
    %c0_33 = arith.constant 0 : index
    %77 = vector.load %arg11[%76, %c0_32, %c0_33] : memref<8x8x128xf32, #tpu.memory_space<vmem>>, vector<1x8x128xf32>
    %78 = vector.shape_cast %77 : vector<1x8x128xf32> to vector<8x128xf32>
    %c0_34 = arith.constant 0 : index
    %c0_35 = arith.constant 0 : index
    %79 = vector.load %arg4[%c0_34, %c0_35] : memref<32x128xf32, #tpu.memory_space<vmem>>, vector<32x128xf32>
    %cst_36 = arith.constant dense<0.000000e+00> : vector<8x128xf32>
    %80 = tpu.matmul %75, %79, %cst_36 {dimension_numbers = #tpu.dot_dimension_numbers<[1], [0], [0], [1], [0, 0, 1, 1], [], []>} : vector<8x32xf32>, vector<32x128xf32>, vector<8x128xf32> -> vector<8x128xf32>
    %81 = arith.addf %78, %80 : vector<8x128xf32>
    %82 = vector.extract_strided_slice %81 {offsets = [0, 0], sizes = [8, 32], strides = [1, 1]} : vector<8x128xf32> to vector<8x32xf32>
    %83 = arith.negf %82 : vector<8x32xf32>
    %84 = math.exp %83 : vector<8x32xf32>
    %cst_37 = arith.constant 1.000000e+00 : f32
    %85 = vector.broadcast %cst_37 : f32 to vector<8x32xf32>
    %86 = arith.addf %85, %84 : vector<8x32xf32>
    %87 = arith.divf %85, %86 : vector<8x32xf32>
    %88 = vector.extract_strided_slice %81 {offsets = [0, 32], sizes = [8, 32], strides = [1, 1]} : vector<8x128xf32> to vector<8x32xf32>
    %89 = arith.negf %88 : vector<8x32xf32>
    %90 = math.exp %89 : vector<8x32xf32>
    %cst_38 = arith.constant 1.000000e+00 : f32
    %91 = vector.broadcast %cst_38 : f32 to vector<8x32xf32>
    %92 = arith.addf %91, %90 : vector<8x32xf32>
    %93 = arith.divf %91, %92 : vector<8x32xf32>
    %94 = vector.extract_strided_slice %81 {offsets = [0, 64], sizes = [8, 32], strides = [1, 1]} : vector<8x128xf32> to vector<8x32xf32>
    %95 = math.tanh %94 : vector<8x32xf32>
    %96 = vector.extract_strided_slice %81 {offsets = [0, 96], sizes = [8, 32], strides = [1, 1]} : vector<8x128xf32> to vector<8x32xf32>
    %97 = arith.negf %96 : vector<8x32xf32>
    %98 = math.exp %97 : vector<8x32xf32>
    %cst_39 = arith.constant 1.000000e+00 : f32
    %99 = vector.broadcast %cst_39 : f32 to vector<8x32xf32>
    %100 = arith.addf %99, %98 : vector<8x32xf32>
    %101 = arith.divf %99, %100 : vector<8x32xf32>
    %102 = arith.mulf %93, %73 : vector<8x32xf32>
    %103 = arith.mulf %87, %95 : vector<8x32xf32>
    %104 = arith.addf %102, %103 : vector<8x32xf32>
    %105 = math.tanh %104 : vector<8x32xf32>
    %106 = arith.mulf %101, %105 : vector<8x32xf32>
    %c3_i32 = arith.constant 3 : i32
    %107 = arith.index_cast %c3_i32 : i32 to index
    %c0_40 = arith.constant 0 : index
    %c0_41 = arith.constant 0 : index
    %108 = vector.load %arg11[%107, %c0_40, %c0_41] : memref<8x8x128xf32, #tpu.memory_space<vmem>>, vector<1x8x128xf32>
    %109 = vector.shape_cast %108 : vector<1x8x128xf32> to vector<8x128xf32>
    %c0_42 = arith.constant 0 : index
    %c0_43 = arith.constant 0 : index
    %110 = vector.load %arg4[%c0_42, %c0_43] : memref<32x128xf32, #tpu.memory_space<vmem>>, vector<32x128xf32>
    %cst_44 = arith.constant dense<0.000000e+00> : vector<8x128xf32>
    %111 = tpu.matmul %106, %110, %cst_44 {dimension_numbers = #tpu.dot_dimension_numbers<[1], [0], [0], [1], [0, 0, 1, 1], [], []>} : vector<8x32xf32>, vector<32x128xf32>, vector<8x128xf32> -> vector<8x128xf32>
    %112 = arith.addf %109, %111 : vector<8x128xf32>
    %113 = vector.extract_strided_slice %112 {offsets = [0, 0], sizes = [8, 32], strides = [1, 1]} : vector<8x128xf32> to vector<8x32xf32>
    %114 = arith.negf %113 : vector<8x32xf32>
    %115 = math.exp %114 : vector<8x32xf32>
    %cst_45 = arith.constant 1.000000e+00 : f32
    %116 = vector.broadcast %cst_45 : f32 to vector<8x32xf32>
    %117 = arith.addf %116, %115 : vector<8x32xf32>
    %118 = arith.divf %116, %117 : vector<8x32xf32>
    %119 = vector.extract_strided_slice %112 {offsets = [0, 32], sizes = [8, 32], strides = [1, 1]} : vector<8x128xf32> to vector<8x32xf32>
    %120 = arith.negf %119 : vector<8x32xf32>
    %121 = math.exp %120 : vector<8x32xf32>
    %cst_46 = arith.constant 1.000000e+00 : f32
    %122 = vector.broadcast %cst_46 : f32 to vector<8x32xf32>
    %123 = arith.addf %122, %121 : vector<8x32xf32>
    %124 = arith.divf %122, %123 : vector<8x32xf32>
    %125 = vector.extract_strided_slice %112 {offsets = [0, 64], sizes = [8, 32], strides = [1, 1]} : vector<8x128xf32> to vector<8x32xf32>
    %126 = math.tanh %125 : vector<8x32xf32>
    %127 = vector.extract_strided_slice %112 {offsets = [0, 96], sizes = [8, 32], strides = [1, 1]} : vector<8x128xf32> to vector<8x32xf32>
    %128 = arith.negf %127 : vector<8x32xf32>
    %129 = math.exp %128 : vector<8x32xf32>
    %cst_47 = arith.constant 1.000000e+00 : f32
    %130 = vector.broadcast %cst_47 : f32 to vector<8x32xf32>
    %131 = arith.addf %130, %129 : vector<8x32xf32>
    %132 = arith.divf %130, %131 : vector<8x32xf32>
    %133 = arith.mulf %124, %104 : vector<8x32xf32>
    %134 = arith.mulf %118, %126 : vector<8x32xf32>
    %135 = arith.addf %133, %134 : vector<8x32xf32>
    %136 = math.tanh %135 : vector<8x32xf32>
    %137 = arith.mulf %132, %136 : vector<8x32xf32>
    %c4_i32 = arith.constant 4 : i32
    %138 = arith.index_cast %c4_i32 : i32 to index
    %c0_48 = arith.constant 0 : index
    %c0_49 = arith.constant 0 : index
    %139 = vector.load %arg11[%138, %c0_48, %c0_49] : memref<8x8x128xf32, #tpu.memory_space<vmem>>, vector<1x8x128xf32>
    %140 = vector.shape_cast %139 : vector<1x8x128xf32> to vector<8x128xf32>
    %c0_50 = arith.constant 0 : index
    %c0_51 = arith.constant 0 : index
    %141 = vector.load %arg4[%c0_50, %c0_51] : memref<32x128xf32, #tpu.memory_space<vmem>>, vector<32x128xf32>
    %cst_52 = arith.constant dense<0.000000e+00> : vector<8x128xf32>
    %142 = tpu.matmul %137, %141, %cst_52 {dimension_numbers = #tpu.dot_dimension_numbers<[1], [0], [0], [1], [0, 0, 1, 1], [], []>} : vector<8x32xf32>, vector<32x128xf32>, vector<8x128xf32> -> vector<8x128xf32>
    %143 = arith.addf %140, %142 : vector<8x128xf32>
    %144 = vector.extract_strided_slice %143 {offsets = [0, 0], sizes = [8, 32], strides = [1, 1]} : vector<8x128xf32> to vector<8x32xf32>
    %145 = arith.negf %144 : vector<8x32xf32>
    %146 = math.exp %145 : vector<8x32xf32>
    %cst_53 = arith.constant 1.000000e+00 : f32
    %147 = vector.broadcast %cst_53 : f32 to vector<8x32xf32>
    %148 = arith.addf %147, %146 : vector<8x32xf32>
    %149 = arith.divf %147, %148 : vector<8x32xf32>
    %150 = vector.extract_strided_slice %143 {offsets = [0, 32], sizes = [8, 32], strides = [1, 1]} : vector<8x128xf32> to vector<8x32xf32>
    %151 = arith.negf %150 : vector<8x32xf32>
    %152 = math.exp %151 : vector<8x32xf32>
    %cst_54 = arith.constant 1.000000e+00 : f32
    %153 = vector.broadcast %cst_54 : f32 to vector<8x32xf32>
    %154 = arith.addf %153, %152 : vector<8x32xf32>
    %155 = arith.divf %153, %154 : vector<8x32xf32>
    %156 = vector.extract_strided_slice %143 {offsets = [0, 64], sizes = [8, 32], strides = [1, 1]} : vector<8x128xf32> to vector<8x32xf32>
    %157 = math.tanh %156 : vector<8x32xf32>
    %158 = vector.extract_strided_slice %143 {offsets = [0, 96], sizes = [8, 32], strides = [1, 1]} : vector<8x128xf32> to vector<8x32xf32>
    %159 = arith.negf %158 : vector<8x32xf32>
    %160 = math.exp %159 : vector<8x32xf32>
    %cst_55 = arith.constant 1.000000e+00 : f32
    %161 = vector.broadcast %cst_55 : f32 to vector<8x32xf32>
    %162 = arith.addf %161, %160 : vector<8x32xf32>
    %163 = arith.divf %161, %162 : vector<8x32xf32>
    %164 = arith.mulf %155, %135 : vector<8x32xf32>
    %165 = arith.mulf %149, %157 : vector<8x32xf32>
    %166 = arith.addf %164, %165 : vector<8x32xf32>
    %167 = math.tanh %166 : vector<8x32xf32>
    %168 = arith.mulf %163, %167 : vector<8x32xf32>
    %c5_i32 = arith.constant 5 : i32
    %169 = arith.index_cast %c5_i32 : i32 to index
    %c0_56 = arith.constant 0 : index
    %c0_57 = arith.constant 0 : index
    %170 = vector.load %arg11[%169, %c0_56, %c0_57] : memref<8x8x128xf32, #tpu.memory_space<vmem>>, vector<1x8x128xf32>
    %171 = vector.shape_cast %170 : vector<1x8x128xf32> to vector<8x128xf32>
    %c0_58 = arith.constant 0 : index
    %c0_59 = arith.constant 0 : index
    %172 = vector.load %arg4[%c0_58, %c0_59] : memref<32x128xf32, #tpu.memory_space<vmem>>, vector<32x128xf32>
    %cst_60 = arith.constant dense<0.000000e+00> : vector<8x128xf32>
    %173 = tpu.matmul %168, %172, %cst_60 {dimension_numbers = #tpu.dot_dimension_numbers<[1], [0], [0], [1], [0, 0, 1, 1], [], []>} : vector<8x32xf32>, vector<32x128xf32>, vector<8x128xf32> -> vector<8x128xf32>
    %174 = arith.addf %171, %173 : vector<8x128xf32>
    %175 = vector.extract_strided_slice %174 {offsets = [0, 0], sizes = [8, 32], strides = [1, 1]} : vector<8x128xf32> to vector<8x32xf32>
    %176 = arith.negf %175 : vector<8x32xf32>
    %177 = math.exp %176 : vector<8x32xf32>
    %cst_61 = arith.constant 1.000000e+00 : f32
    %178 = vector.broadcast %cst_61 : f32 to vector<8x32xf32>
    %179 = arith.addf %178, %177 : vector<8x32xf32>
    %180 = arith.divf %178, %179 : vector<8x32xf32>
    %181 = vector.extract_strided_slice %174 {offsets = [0, 32], sizes = [8, 32], strides = [1, 1]} : vector<8x128xf32> to vector<8x32xf32>
    %182 = arith.negf %181 : vector<8x32xf32>
    %183 = math.exp %182 : vector<8x32xf32>
    %cst_62 = arith.constant 1.000000e+00 : f32
    %184 = vector.broadcast %cst_62 : f32 to vector<8x32xf32>
    %185 = arith.addf %184, %183 : vector<8x32xf32>
    %186 = arith.divf %184, %185 : vector<8x32xf32>
    %187 = vector.extract_strided_slice %174 {offsets = [0, 64], sizes = [8, 32], strides = [1, 1]} : vector<8x128xf32> to vector<8x32xf32>
    %188 = math.tanh %187 : vector<8x32xf32>
    %189 = vector.extract_strided_slice %174 {offsets = [0, 96], sizes = [8, 32], strides = [1, 1]} : vector<8x128xf32> to vector<8x32xf32>
    %190 = arith.negf %189 : vector<8x32xf32>
    %191 = math.exp %190 : vector<8x32xf32>
    %cst_63 = arith.constant 1.000000e+00 : f32
    %192 = vector.broadcast %cst_63 : f32 to vector<8x32xf32>
    %193 = arith.addf %192, %191 : vector<8x32xf32>
    %194 = arith.divf %192, %193 : vector<8x32xf32>
    %195 = arith.mulf %186, %166 : vector<8x32xf32>
    %196 = arith.mulf %180, %188 : vector<8x32xf32>
    %197 = arith.addf %195, %196 : vector<8x32xf32>
    %198 = math.tanh %197 : vector<8x32xf32>
    %199 = arith.mulf %194, %198 : vector<8x32xf32>
    %c6_i32 = arith.constant 6 : i32
    %200 = arith.index_cast %c6_i32 : i32 to index
    %c0_64 = arith.constant 0 : index
    %c0_65 = arith.constant 0 : index
    %201 = vector.load %arg11[%200, %c0_64, %c0_65] : memref<8x8x128xf32, #tpu.memory_space<vmem>>, vector<1x8x128xf32>
    %202 = vector.shape_cast %201 : vector<1x8x128xf32> to vector<8x128xf32>
    %c0_66 = arith.constant 0 : index
    %c0_67 = arith.constant 0 : index
    %203 = vector.load %arg4[%c0_66, %c0_67] : memref<32x128xf32, #tpu.memory_space<vmem>>, vector<32x128xf32>
    %cst_68 = arith.constant dense<0.000000e+00> : vector<8x128xf32>
    %204 = tpu.matmul %199, %203, %cst_68 {dimension_numbers = #tpu.dot_dimension_numbers<[1], [0], [0], [1], [0, 0, 1, 1], [], []>} : vector<8x32xf32>, vector<32x128xf32>, vector<8x128xf32> -> vector<8x128xf32>
    %205 = arith.addf %202, %204 : vector<8x128xf32>
    %206 = vector.extract_strided_slice %205 {offsets = [0, 0], sizes = [8, 32], strides = [1, 1]} : vector<8x128xf32> to vector<8x32xf32>
    %207 = arith.negf %206 : vector<8x32xf32>
    %208 = math.exp %207 : vector<8x32xf32>
    %cst_69 = arith.constant 1.000000e+00 : f32
    %209 = vector.broadcast %cst_69 : f32 to vector<8x32xf32>
    %210 = arith.addf %209, %208 : vector<8x32xf32>
    %211 = arith.divf %209, %210 : vector<8x32xf32>
    %212 = vector.extract_strided_slice %205 {offsets = [0, 32], sizes = [8, 32], strides = [1, 1]} : vector<8x128xf32> to vector<8x32xf32>
    %213 = arith.negf %212 : vector<8x32xf32>
    %214 = math.exp %213 : vector<8x32xf32>
    %cst_70 = arith.constant 1.000000e+00 : f32
    %215 = vector.broadcast %cst_70 : f32 to vector<8x32xf32>
    %216 = arith.addf %215, %214 : vector<8x32xf32>
    %217 = arith.divf %215, %216 : vector<8x32xf32>
    %218 = vector.extract_strided_slice %205 {offsets = [0, 64], sizes = [8, 32], strides = [1, 1]} : vector<8x128xf32> to vector<8x32xf32>
    %219 = math.tanh %218 : vector<8x32xf32>
    %220 = vector.extract_strided_slice %205 {offsets = [0, 96], sizes = [8, 32], strides = [1, 1]} : vector<8x128xf32> to vector<8x32xf32>
    %221 = arith.negf %220 : vector<8x32xf32>
    %222 = math.exp %221 : vector<8x32xf32>
    %cst_71 = arith.constant 1.000000e+00 : f32
    %223 = vector.broadcast %cst_71 : f32 to vector<8x32xf32>
    %224 = arith.addf %223, %222 : vector<8x32xf32>
    %225 = arith.divf %223, %224 : vector<8x32xf32>
    %226 = arith.mulf %217, %197 : vector<8x32xf32>
    %227 = arith.mulf %211, %219 : vector<8x32xf32>
    %228 = arith.addf %226, %227 : vector<8x32xf32>
    %229 = math.tanh %228 : vector<8x32xf32>
    %230 = arith.mulf %225, %229 : vector<8x32xf32>
    %c7_i32 = arith.constant 7 : i32
    %231 = arith.index_cast %c7_i32 : i32 to index
    %c0_72 = arith.constant 0 : index
    %c0_73 = arith.constant 0 : index
    %232 = vector.load %arg11[%231, %c0_72, %c0_73] : memref<8x8x128xf32, #tpu.memory_space<vmem>>, vector<1x8x128xf32>
    %233 = vector.shape_cast %232 : vector<1x8x128xf32> to vector<8x128xf32>
    %c0_74 = arith.constant 0 : index
    %c0_75 = arith.constant 0 : index
    %234 = vector.load %arg4[%c0_74, %c0_75] : memref<32x128xf32, #tpu.memory_space<vmem>>, vector<32x128xf32>
    %cst_76 = arith.constant dense<0.000000e+00> : vector<8x128xf32>
    %235 = tpu.matmul %230, %234, %cst_76 {dimension_numbers = #tpu.dot_dimension_numbers<[1], [0], [0], [1], [0, 0, 1, 1], [], []>} : vector<8x32xf32>, vector<32x128xf32>, vector<8x128xf32> -> vector<8x128xf32>
    %236 = arith.addf %233, %235 : vector<8x128xf32>
    %237 = vector.extract_strided_slice %236 {offsets = [0, 0], sizes = [8, 32], strides = [1, 1]} : vector<8x128xf32> to vector<8x32xf32>
    %238 = arith.negf %237 : vector<8x32xf32>
    %239 = math.exp %238 : vector<8x32xf32>
    %cst_77 = arith.constant 1.000000e+00 : f32
    %240 = vector.broadcast %cst_77 : f32 to vector<8x32xf32>
    %241 = arith.addf %240, %239 : vector<8x32xf32>
    %242 = arith.divf %240, %241 : vector<8x32xf32>
    %243 = vector.extract_strided_slice %236 {offsets = [0, 32], sizes = [8, 32], strides = [1, 1]} : vector<8x128xf32> to vector<8x32xf32>
    %244 = arith.negf %243 : vector<8x32xf32>
    %245 = math.exp %244 : vector<8x32xf32>
    %cst_78 = arith.constant 1.000000e+00 : f32
    %246 = vector.broadcast %cst_78 : f32 to vector<8x32xf32>
    %247 = arith.addf %246, %245 : vector<8x32xf32>
    %248 = arith.divf %246, %247 : vector<8x32xf32>
    %249 = vector.extract_strided_slice %236 {offsets = [0, 64], sizes = [8, 32], strides = [1, 1]} : vector<8x128xf32> to vector<8x32xf32>
    %250 = math.tanh %249 : vector<8x32xf32>
    %251 = vector.extract_strided_slice %236 {offsets = [0, 96], sizes = [8, 32], strides = [1, 1]} : vector<8x128xf32> to vector<8x32xf32>
    %252 = arith.negf %251 : vector<8x32xf32>
    %253 = math.exp %252 : vector<8x32xf32>
    %cst_79 = arith.constant 1.000000e+00 : f32
    %254 = vector.broadcast %cst_79 : f32 to vector<8x32xf32>
    %255 = arith.addf %254, %253 : vector<8x32xf32>
    %256 = arith.divf %254, %255 : vector<8x32xf32>
    %257 = arith.mulf %248, %228 : vector<8x32xf32>
    %258 = arith.mulf %242, %250 : vector<8x32xf32>
    %259 = arith.addf %257, %258 : vector<8x32xf32>
    %260 = math.tanh %259 : vector<8x32xf32>
    %261 = arith.mulf %256, %260 : vector<8x32xf32>
    %c8_i32 = arith.constant 8 : i32
    %c0_80 = arith.constant 0 : index
    %c0_81 = arith.constant 0 : index
    %262 = vector.load %arg9[%c0_80, %c0_81] : memref<8x32xf32, #tpu.memory_space<vmem>>, vector<8x32xf32>
    tpu.vector_store %arg9[%c0_80, %c0_81], %261 {strides = array<i32>} : memref<8x32xf32, #tpu.memory_space<vmem>>, vector<8x32xf32>,
    %c0_82 = arith.constant 0 : index
    %c0_83 = arith.constant 0 : index
    %263 = vector.load %arg10[%c0_82, %c0_83] : memref<8x32xf32, #tpu.memory_space<vmem>>, vector<8x32xf32>
    tpu.vector_store %arg10[%c0_82, %c0_83], %259 {strides = array<i32>} : memref<8x32xf32, #tpu.memory_space<vmem>>, vector<8x32xf32>,
    %c0_i32_84 = arith.constant 0 : i32
    %264 = arith.cmpi eq, %arg1, %c0_i32_84 : i32
    %265 = arith.extui %264 : i1 to i32
    %c0_i32_85 = arith.constant 0 : i32
    %266 = arith.cmpi ne, %265, %c0_i32_85 : i32
    scf.if %266 {
      %c0_86 = arith.constant 0 : index
      %c0_87 = arith.constant 0 : index
      %267 = vector.load %arg6[%c0_86, %c0_87] : memref<32x128xf32, #tpu.memory_space<vmem>>, vector<32x128xf32>
      %cst_88 = arith.constant dense<0.000000e+00> : vector<8x128xf32>
      %268 = tpu.matmul %261, %267, %cst_88 {dimension_numbers = #tpu.dot_dimension_numbers<[1], [0], [0], [1], [0, 0, 1, 1], [], []>} : vector<8x32xf32>, vector<32x128xf32>, vector<8x128xf32> -> vector<8x128xf32>
      %c0_89 = arith.constant 0 : index
      %c0_90 = arith.constant 0 : index
      %269 = vector.load %arg7[%c0_89, %c0_90] : memref<1x128xf32, #tpu.memory_space<vmem>>, vector<1x128xf32>
      %270 = vector.broadcast %269 : vector<1x128xf32> to vector<8x128xf32>
      %271 = arith.addf %268, %270 : vector<8x128xf32>
      %c0_91 = arith.constant 0 : index
      %c0_92 = arith.constant 0 : index
      %272 = vector.load %arg8[%c0_91, %c0_92] : memref<8x128xf32, #tpu.memory_space<vmem>>, vector<8x128xf32>
      tpu.vector_store %arg8[%c0_91, %c0_92], %271 {strides = array<i32>} : memref<8x128xf32, #tpu.memory_space<vmem>>, vector<8x128xf32>,
    } else {
    }
    return
  }
  func.func @transform_0(%arg0: i32, %arg1: i32) -> (i32, i32, i32, i32) {
    %c0_i32 = arith.constant 0 : i32
    %c0_i32_0 = arith.constant 0 : i32
    %c0_i32_1 = arith.constant 0 : i32
    return %arg0, %arg1, %c0_i32, %c0_i32_0 : i32, i32, i32, i32
  }
  func.func @transform_1(%arg0: i32, %arg1: i32) -> (i32, i32) {
    %c0_i32 = arith.constant 0 : i32
    %c0_i32_0 = arith.constant 0 : i32
    %c0_i32_1 = arith.constant 0 : i32
    return %c0_i32, %c0_i32_0 : i32, i32
  }
  func.func @transform_2(%arg0: i32, %arg1: i32) -> (i32, i32) {
    %c0_i32 = arith.constant 0 : i32
    %c0_i32_0 = arith.constant 0 : i32
    %c0_i32_1 = arith.constant 0 : i32
    return %c0_i32, %c0_i32_0 : i32, i32
  }
  func.func @transform_3(%arg0: i32, %arg1: i32) -> (i32, i32) {
    %c0_i32 = arith.constant 0 : i32
    %c0_i32_0 = arith.constant 0 : i32
    %c0_i32_1 = arith.constant 0 : i32
    return %c0_i32, %c0_i32_0 : i32, i32
  }
  func.func @transform_4(%arg0: i32, %arg1: i32) -> (i32, i32) {
    %c0_i32 = arith.constant 0 : i32
    %c0_i32_0 = arith.constant 0 : i32
    %c0_i32_1 = arith.constant 0 : i32
    return %c0_i32, %c0_i32_0 : i32, i32
  }
  func.func @transform_5(%arg0: i32, %arg1: i32) -> (i32, i32) {
    %c0_i32 = arith.constant 0 : i32
    %c0_i32_0 = arith.constant 0 : i32
    %c0_i32_1 = arith.constant 0 : i32
    return %c0_i32, %c0_i32_0 : i32, i32
  }
  func.func @transform_6(%arg0: i32, %arg1: i32) -> (i32, i32) {
    %c0_i32 = arith.constant 0 : i32
    %c0_i32_0 = arith.constant 0 : i32
    return %arg0, %c0_i32 : i32, i32
  }
}

</mosaic_0001>

<llo_original>
// kernel: tpu_custom_call.1
$region0: #{tpu_custom_call.1}
  #allocation0 [shape = 'u32[]', space=smem, size = 0x4, offset = 0x4, fixed_abs, tag = 'smem constant byte address 0x4 - core index']
  #allocation1 [shape = 'u32[144,128]{1,0:T(1,128)}', space=vmem, size = 0x12000, scoped, tag = 'internal scratch']
  #allocation2 [shape = 'f32[8,32]{1,0:T(8,128)}', space=vmem, size = 0x1000, scoped, tag = 'scratch operand']
  #allocation3 [shape = 'f32[8,32]{1,0:T(8,128)}', space=vmem, size = 0x1000, scoped, tag = 'scratch operand']
  #allocation4 [shape = 'f32[8,8,128]{2,1,0:T(8,128)}', space=vmem, size = 0x8000, scoped, tag = 'scratch operand']
  %s0 = inlined_call_operand.vmem [shape: f32[1,1,64,16], index: 0, kind: input, shape index: {}]
  %s1 = inlined_call_operand.vmem [shape: f32[16,128], index: 1, kind: input, shape index: {}]
  %s2 = inlined_call_operand.vmem [shape: f32[32,128], index: 2, kind: input, shape index: {}]
  %s3 = inlined_call_operand.vmem [shape: f32[1,128], index: 3, kind: input, shape index: {}]
  %s4 = inlined_call_operand.vmem [shape: f32[32,128], index: 4, kind: input, shape index: {}]
  %s5 = inlined_call_operand.vmem [shape: f32[1,128], index: 5, kind: input, shape index: {}]
  %s6 = inlined_call_operand.hbm [shape: f32[8,128], index: 6, kind: output, shape index: {}]
  %s7 = sld [smem:[#allocation0]]
  $region42: #{tpu_custom_call.1} parent=0
    _
  %s9 = ssub.s32 1, %s7
  %s10 = scalar_select 0, %s9, %s7
  $region1: #{tpu_custom_call.1} parent=0
    #allocation5 [shape = 'u8[4096]{0}', space=vmem, size = 0x1000, scoped, tag = 'output window, operand 0, single buffered']
    #allocation6 [shape = 's32[1]{0}', space=sflag, size = 0x4, scoped, tag = 'scoped memory for tpu_custom_call.1']
    %11 = vsyncpa [#allocation6], 0
    // Predicated region
    $region2: #{tpu_custom_call.1} parent=1 // pred_check
      _
    $region3: #{tpu_custom_call.1} parent=1 // pred_check_branch
      %13 = sbr.rel (0) target = $region5
    $region4: #{tpu_custom_call.1} parent=1 // pred_region
      _
    $region5: #{tpu_custom_call.1} parent=1 // pred_fallthru
      _
    // Predicated region
    $region6: #{tpu_custom_call.1} parent=1 // pred_check
      _
    $region7: #{tpu_custom_call.1} parent=1 // pred_check_branch
      %15 = sbr.rel (0) target = $region9
    $region8: #{tpu_custom_call.1} parent=1 // pred_region
      _
    $region9: #{tpu_custom_call.1} parent=1 // pred_fallthru
      _
    // Predicated region
    $region10: #{tpu_custom_call.1} parent=1 // pred_check
      _
    $region11: #{tpu_custom_call.1} parent=1 // pred_check_branch
      %17 = sbr.rel (0) target = $region13
    $region12: #{tpu_custom_call.1} parent=1 // pred_region
      _
    $region13: #{tpu_custom_call.1} parent=1 // pred_fallthru
      _
    // Predicated region
    $region14: #{tpu_custom_call.1} parent=1 // pred_check
      _
    $region15: #{tpu_custom_call.1} parent=1 // pred_check_branch
      %19 = sbr.rel (0) target = $region17
    $region16: #{tpu_custom_call.1} parent=1 // pred_region
      _
    $region17: #{tpu_custom_call.1} parent=1 // pred_fallthru
      _
    // Predicated region
    $region18: #{tpu_custom_call.1} parent=1 // pred_check
      _
    $region19: #{tpu_custom_call.1} parent=1 // pred_check_branch
      %21 = sbr.rel (0) target = $region21
    $region20: #{tpu_custom_call.1} parent=1 // pred_region
      _
    $region21: #{tpu_custom_call.1} parent=1 // pred_fallthru
      _
    // Predicated region
    $region22: #{tpu_custom_call.1} parent=1 // pred_check
      _
    $region23: #{tpu_custom_call.1} parent=1 // pred_check_branch
      %23 = sbr.rel (0) target = $region25
    $region24: #{tpu_custom_call.1} parent=1 // pred_region
      _
    $region25: #{tpu_custom_call.1} parent=1 // pred_fallthru
      _
    %p24 = scmp.eq.s32.totalorder 0, 0
    // Predicated region
    $region26: #{tpu_custom_call.1} parent=1 // pred_check
      %p25 = pneg %p24
    $region27: #{tpu_custom_call.1} parent=1 // pred_check_branch
      %27 = sbr.rel (%p25) target = $region29
    $region28: #{tpu_custom_call.1} parent=1 // pred_region
      %vm28 = vcmask 261120
      %29 = vst.msk [vmem:[#allocation2] sm:$0xff] %vm28, 0.0
      %30 = vst.msk [vmem:[#allocation3] sm:$0xff] %vm28, 0.0
    $region29: #{tpu_custom_call.1} parent=1 // pred_fallthru
      _
    %v31 = vld [vmem:[%s0] sm:$0xff]
    %v32 = vld [vmem:[%s0 + $0x8] sm:$0xff]
    %v33 = vld [vmem:[%s0 + $0x10] sm:$0xff]
    %v34 = vld [vmem:[%s0 + $0x18] sm:$0xff]
    %v35 = vld [vmem:[%s0 + $0x20] sm:$0xff]
    %v36 = vld [vmem:[%s0 + $0x28] sm:$0xff]
    %v37 = vld [vmem:[%s0 + $0x30] sm:$0xff]
    %v38 = vld [vmem:[%s0 + $0x38] sm:$0xff]
    %v39 = vld [vmem:[%s1] sm:$0xff]
    %v40 = vld [vmem:[%s1 + $0x8] sm:$0xff]
    %v41 = vld [vmem:[%s3] sm:$0x1]
    %v43 = vlaneseq
    %v44 = vshrl.u32 %v43, 7
    %v45 = vsub.s32 0, %v44
    %v46 = vrot.slane %v41, %v45
    %vm48 = vcmask 130048
    %v50 = vsel %vm48, %v31, 0
    %v53 = vsel %vm48, %v32, 0
    %v56 = vsel %vm48, %v33, 0
    %v59 = vsel %vm48, %v34, 0
    %v62 = vsel %vm48, %v35, 0
    %v65 = vsel %vm48, %v36, 0
    %v68 = vsel %vm48, %v37, 0
    %v71 = vsel %vm48, %v38, 0
    %73 = vmatprep.subr.mxu0 0.0
    %74 = vmatpush1.msra.mxu0 %v39
    %75 = vmatprep.subr.mxu0 0.0
    %76 = vmatpush1.msra.mxu0 %v40
    %77 = vmatprep.subr.mxu0 0.0
    %78 = vmatpush1.msra.mxu0 0.0
    %79 = vmatprep.subr.mxu0 0.0
    %80 = vmatpush1.msra.mxu0 0.0
    %81 = vmatprep.subr.mxu0 0.0
    %82 = vmatpush1.msra.mxu0 0.0
    %83 = vmatprep.subr.mxu0 0.0
    %84 = vmatpush1.msra.mxu0 0.0
    %85 = vmatprep.subr.mxu0 0.0
    %86 = vmatpush1.msra.mxu0 0.0
    %87 = vmatprep.subr.mxu0 0.0
    %88 = vmatpush1.msra.mxu0 0.0
    %89 = vmatprep.subr.mxu0 0.0
    %90 = vmatpush1.msra.mxu0 0.0
    %91 = vmatprep.subr.mxu0 0.0
    %92 = vmatpush1.msra.mxu0 0.0
    %93 = vmatprep.subr.mxu0 0.0
    %94 = vmatpush1.msra.mxu0 0.0
    %95 = vmatprep.subr.mxu0 0.0
    %96 = vmatpush1.msra.mxu0 0.0
    %97 = vmatprep.subr.mxu0 0.0
    %98 = vmatpush1.msra.mxu0 0.0
    %99 = vmatprep.subr.mxu0 0.0
    %100 = vmatpush1.msra.mxu0 0.0
    %101 = vmatprep.subr.mxu0 0.0
    %102 = vmatpush1.msra.mxu0 0.0
    %103 = vmatprep.subr.mxu0 0.0
    %104 = vmatpush1.msra.mxu0 0.0
    %105 = vmatprep.subr.mxu0 0.0
    %106 = vmatpush1.msra.mxu0 0.0
    %107 = vmatprep.subr.mxu0 0.0
    %108 = vmatpush1.msra.mxu0 0.0
    %109 = vmatprep.subr.mxu0 0.0
    %110 = vmatpush1.msra.mxu0 0.0
    %111 = vmatprep.subr.mxu0 0.0
    %112 = vmatpush1.msra.mxu0 0.0
    %113 = vmatprep.subr.mxu0 0.0
    %114 = vmatpush1.msra.mxu0 0.0
    %115 = vmatprep.subr.mxu0 0.0
    %116 = vmatpush1.msra.mxu0 0.0
    %117 = vmatprep.subr.mxu0 0.0
    %118 = vmatpush1.msra.mxu0 0.0
    %119 = vmatprep.subr.mxu0 0.0
    %120 = vmatpush1.msra.mxu0 0.0
    %121 = vmatprep.subr.mxu0 0.0
    %122 = vmatpush1.msra.mxu0 0.0
    %123 = vmatprep.subr.mxu0 0.0
    %124 = vmatpush1.msra.mxu0 0.0
    %125 = vmatprep.subr.mxu0 0.0
    %126 = vmatpush1.msra.mxu0 0.0
    %127 = vmatprep.subr.mxu0 0.0
    %128 = vmatpush1.msra.mxu0 0.0
    %129 = vmatprep.subr.mxu0 0.0
    %130 = vmatpush1.msra.mxu0 0.0
    %131 = vmatprep.subr.mxu0 0.0
    %132 = vmatpush1.msra.mxu0 0.0
    %133 = vmatprep.subr.mxu0 0.0
    %134 = vmatpush1.msra.mxu0 0.0
    %135 = vmatprep.subr.mxu0 0.0
    %136 = vmatpush1.msra.mxu0 0.0
    %137 = vmatprep.mubr.f32.mxu0 0.0
    %138 = vmatmul.mubr.f32.gmra.mrb[0].mxu0 %v50
    %v139 = vpop.f32.mrb[0].mxu0
    %v140 = vadd.f32 %v46, %v139
    %v141 = vpop.f32.mrb[0].mxu0
    %142 = vmatprep.mubr.f32.mxu0 0.0
    %143 = vmatmul.mubr.f32.gmra.mrb[0].mxu0 %v53
    %v144 = vpop.f32.mrb[0].mxu0
    %v145 = vadd.f32 %v46, %v144
    %v146 = vpop.f32.mrb[0].mxu0
    %147 = vmatprep.mubr.f32.mxu0 0.0
    %148 = vmatmul.mubr.f32.gmra.mrb[0].mxu0 %v56
    %v149 = vpop.f32.mrb[0].mxu0
    %v150 = vadd.f32 %v46, %v149
    %v151 = vpop.f32.mrb[0].mxu0
    %152 = vmatprep.mubr.f32.mxu0 0.0
    %153 = vmatmul.mubr.f32.gmra.mrb[0].mxu0 %v59
    %v154 = vpop.f32.mrb[0].mxu0
    %v155 = vadd.f32 %v46, %v154
    %v156 = vpop.f32.mrb[0].mxu0
    %157 = vmatprep.mubr.f32.mxu0 0.0
    %158 = vmatmul.mubr.f32.gmra.mrb[0].mxu0 %v62
    %v159 = vpop.f32.mrb[0].mxu0
    %v160 = vadd.f32 %v46, %v159
    %v161 = vpop.f32.mrb[0].mxu0
    %162 = vmatprep.mubr.f32.mxu0 0.0
    %163 = vmatmul.mubr.f32.gmra.mrb[0].mxu0 %v65
    %v164 = vpop.f32.mrb[0].mxu0
    %v165 = vadd.f32 %v46, %v164
    %v166 = vpop.f32.mrb[0].mxu0
    %167 = vmatprep.mubr.f32.mxu0 0.0
    %168 = vmatmul.mubr.f32.gmra.mrb[0].mxu0 %v68
    %v169 = vpop.f32.mrb[0].mxu0
    %v170 = vadd.f32 %v46, %v169
    %v171 = vpop.f32.mrb[0].mxu0
    %172 = vmatprep.mubr.f32.mxu0 0.0
    %173 = vmatmul.mubr.f32.gmra.mrb[0].mxu0 %v71
    %v174 = vpop.f32.mrb[0].mxu0
    %v175 = vadd.f32 %v46, %v174
    %v176 = vpop.f32.mrb[0].mxu0
    %177 = vdwg.mxu0
    %178 = vst [vmem:[#allocation4] sm:$0xff] %v140
    %179 = vst [vmem:[#allocation4 + $0x8] sm:$0xff] %v145
    %180 = vst [vmem:[#allocation4 + $0x10] sm:$0xff] %v150
    %181 = vst [vmem:[#allocation4 + $0x18] sm:$0xff] %v155
    %182 = vst [vmem:[#allocation4 + $0x20] sm:$0xff] %v160
    %183 = vst [vmem:[#allocation4 + $0x28] sm:$0xff] %v165
    %184 = vst [vmem:[#allocation4 + $0x30] sm:$0xff] %v170
    %185 = vst [vmem:[#allocation4 + $0x38] sm:$0xff] %v175
    %v186 = vld [vmem:[#allocation2] sm:$0xff]
    %v187 = vld [vmem:[#allocation3] sm:$0xff]
    %v188 = vld [vmem:[#allocation4] sm:$0xff]
    %v189 = vld [vmem:[%s2] sm:$0xff]
    %v190 = vld [vmem:[%s2 + $0x8] sm:$0xff]
    %v191 = vld [vmem:[%s2 + $0x10] sm:$0xff]
    %v192 = vld [vmem:[%s2 + $0x18] sm:$0xff]
    %vm193 = vcmask 261120
    %v195 = vsel %vm193, %v186, 0
    %197 = vmatprep.subr.mxu0 0.0
    %198 = vmatpush1.msra.mxu0 %v189
    %199 = vmatprep.subr.mxu0 0.0
    %200 = vmatpush1.msra.mxu0 %v190
    %201 = vmatprep.subr.mxu0 0.0
    %202 = vmatpush1.msra.mxu0 %v191
    %203 = vmatprep.subr.mxu0 0.0
    %204 = vmatpush1.msra.mxu0 %v192
    %205 = vmatprep.subr.mxu0 0.0
    %206 = vmatpush1.msra.mxu0 0.0
    %207 = vmatprep.subr.mxu0 0.0
    %208 = vmatpush1.msra.mxu0 0.0
    %209 = vmatprep.subr.mxu0 0.0
    %210 = vmatpush1.msra.mxu0 0.0
    %211 = vmatprep.subr.mxu0 0.0
    %212 = vmatpush1.msra.mxu0 0.0
    %213 = vmatprep.subr.mxu0 0.0
    %214 = vmatpush1.msra.mxu0 0.0
    %215 = vmatprep.subr.mxu0 0.0
    %216 = vmatpush1.msra.mxu0 0.0
    %217 = vmatprep.subr.mxu0 0.0
    %218 = vmatpush1.msra.mxu0 0.0
    %219 = vmatprep.subr.mxu0 0.0
    %220 = vmatpush1.msra.mxu0 0.0
    %221 = vmatprep.subr.mxu0 0.0
    %222 = vmatpush1.msra.mxu0 0.0
    %223 = vmatprep.subr.mxu0 0.0
    %224 = vmatpush1.msra.mxu0 0.0
    %225 = vmatprep.subr.mxu0 0.0
    %226 = vmatpush1.msra.mxu0 0.0
    %227 = vmatprep.subr.mxu0 0.0
    %228 = vmatpush1.msra.mxu0 0.0
    %229 = vmatprep.subr.mxu0 0.0
    %230 = vmatpush1.msra.mxu0 0.0
    %231 = vmatprep.subr.mxu0 0.0
    %232 = vmatpush1.msra.mxu0 0.0
    %233 = vmatprep.subr.mxu0 0.0
    %234 = vmatpush1.msra.mxu0 0.0
    %235 = vmatprep.subr.mxu0 0.0
    %236 = vmatpush1.msra.mxu0 0.0
    %237 = vmatprep.subr.mxu0 0.0
    %238 = vmatpush1.msra.mxu0 0.0
    %239 = vmatprep.subr.mxu0 0.0
    %240 = vmatpush1.msra.mxu0 0.0
    %241 = vmatprep.subr.mxu0 0.0
    %242 = vmatpush1.msra.mxu0 0.0
    %243 = vmatprep.subr.mxu0 0.0
    %244 = vmatpush1.msra.mxu0 0.0
    %245 = vmatprep.subr.mxu0 0.0
    %246 = vmatpush1.msra.mxu0 0.0
    %247 = vmatprep.subr.mxu0 0.0
    %248 = vmatpush1.msra.mxu0 0.0
    %249 = vmatprep.subr.mxu0 0.0
    %250 = vmatpush1.msra.mxu0 0.0
    %251 = vmatprep.subr.mxu0 0.0
    %252 = vmatpush1.msra.mxu0 0.0
    %253 = vmatprep.subr.mxu0 0.0
    %254 = vmatpush1.msra.mxu0 0.0
    %255 = vmatprep.subr.mxu0 0.0
    %256 = vmatpush1.msra.mxu0 0.0
    %257 = vmatprep.subr.mxu0 0.0
    %258 = vmatpush1.msra.mxu0 0.0
    %259 = vmatprep.subr.mxu0 0.0
    %260 = vmatpush1.msra.mxu0 0.0
    %261 = vmatprep.mubr.f32.mxu0 0.0
    %262 = vmatmul.mubr.f32.gmra.mrb[0].mxu0 %v195
    %v263 = vpop.f32.mrb[0].mxu0
    %v264 = vadd.f32 0.0, %v263
    %v265 = vpop.f32.mrb[0].mxu0
    %266 = vdwg.mxu0
    %v267 = vadd.f32 %v188, %v264
    %v268 = vxor.u32 %v267, 2147483648
    %v269 = vmul.f32 %v268, 1.442695
    %v270 = vpow.pop %v269
    %v271 = vadd.f32 %v270, 1.0
    %v272 = vrcp.pop %v271
    %v273 = vmul.f32 1.0, %v272
    %v274 = vtanh.pop %v267
    %276 = vrot.lane.b32.xlu0 %v187, 32
    %v277 = vpop.permute.xlu0 %276
    %v279 = vmul.f32 %v273, %v277
    %281 = vrot.lane.b32.xlu0 %v274, 64
    %v282 = vpop.permute.xlu0 %281
    %v284 = vmul.f32 %v273, %v282
    %286 = vrot.lane.b32.xlu0 %v284, 32
    %v287 = vpop.permute.xlu0 %286
    %v289 = vadd.f32 %v279, %v287
    %v290 = vtanh.pop %v289
    %292 = vrot.lane.b32.xlu0 %v290, 64
    %v293 = vpop.permute.xlu0 %292
    %v295 = vmul.f32 %v273, %v293
    %s296 = scalar_lea.vmem [#allocation4], 8
    %v297 = vld [vmem:[%s296] sm:$0xff]
    %299 = vrot.lane.b32.xlu0 %v295, 32
    %v300 = vpop.permute.xlu0 %299
    %v301 = vsel %vm193, %v300, 0
    %303 = vmatprep.subr.mxu0 0.0
    %304 = vmatpush1.msra.mxu0 %v189
    %305 = vmatprep.subr.mxu0 0.0
    %306 = vmatpush1.msra.mxu0 %v190
    %307 = vmatprep.subr.mxu0 0.0
    %308 = vmatpush1.msra.mxu0 %v191
    %309 = vmatprep.subr.mxu0 0.0
    %310 = vmatpush1.msra.mxu0 %v192
    %311 = vmatprep.subr.mxu0 0.0
    %312 = vmatpush1.msra.mxu0 0.0
    %313 = vmatprep.subr.mxu0 0.0
    %314 = vmatpush1.msra.mxu0 0.0
    %315 = vmatprep.subr.mxu0 0.0
    %316 = vmatpush1.msra.mxu0 0.0
    %317 = vmatprep.subr.mxu0 0.0
    %318 = vmatpush1.msra.mxu0 0.0
    %319 = vmatprep.subr.mxu0 0.0
    %320 = vmatpush1.msra.mxu0 0.0
    %321 = vmatprep.subr.mxu0 0.0
    %322 = vmatpush1.msra.mxu0 0.0
    %323 = vmatprep.subr.mxu0 0.0
    %324 = vmatpush1.msra.mxu0 0.0
    %325 = vmatprep.subr.mxu0 0.0
    %326 = vmatpush1.msra.mxu0 0.0
    %327 = vmatprep.subr.mxu0 0.0
    %328 = vmatpush1.msra.mxu0 0.0
    %329 = vmatprep.subr.mxu0 0.0
    %330 = vmatpush1.msra.mxu0 0.0
    %331 = vmatprep.subr.mxu0 0.0
    %332 = vmatpush1.msra.mxu0 0.0
    %333 = vmatprep.subr.mxu0 0.0
    %334 = vmatpush1.msra.mxu0 0.0
    %335 = vmatprep.subr.mxu0 0.0
    %336 = vmatpush1.msra.mxu0 0.0
    %337 = vmatprep.subr.mxu0 0.0
    %338 = vmatpush1.msra.mxu0 0.0
    %339 = vmatprep.subr.mxu0 0.0
    %340 = vmatpush1.msra.mxu0 0.0
    %341 = vmatprep.subr.mxu0 0.0
    %342 = vmatpush1.msra.mxu0 0.0
    %343 = vmatprep.subr.mxu0 0.0
    %344 = vmatpush1.msra.mxu0 0.0
    %345 = vmatprep.subr.mxu0 0.0
    %346 = vmatpush1.msra.mxu0 0.0
    %347 = vmatprep.subr.mxu0 0.0
    %348 = vmatpush1.msra.mxu0 0.0
    %349 = vmatprep.subr.mxu0 0.0
    %350 = vmatpush1.msra.mxu0 0.0
    %351 = vmatprep.subr.mxu0 0.0
    %352 = vmatpush1.msra.mxu0 0.0
    %353 = vmatprep.subr.mxu0 0.0
    %354 = vmatpush1.msra.mxu0 0.0
    %355 = vmatprep.subr.mxu0 0.0
    %356 = vmatpush1.msra.mxu0 0.0
    %357 = vmatprep.subr.mxu0 0.0
    %358 = vmatpush1.msra.mxu0 0.0
    %359 = vmatprep.subr.mxu0 0.0
    %360 = vmatpush1.msra.mxu0 0.0
    %361 = vmatprep.subr.mxu0 0.0
    %362 = vmatpush1.msra.mxu0 0.0
    %363 = vmatprep.subr.mxu0 0.0
    %364 = vmatpush1.msra.mxu0 0.0
    %365 = vmatprep.subr.mxu0 0.0
    %366 = vmatpush1.msra.mxu0 0.0
    %367 = vmatprep.mubr.f32.mxu0 0.0
    %368 = vmatmul.mubr.f32.gmra.mrb[0].mxu0 %v301
    %v369 = vpop.f32.mrb[0].mxu0
    %v370 = vadd.f32 0.0, %v369
    %v371 = vpop.f32.mrb[0].mxu0
    %372 = vdwg.mxu0
    %v373 = vadd.f32 %v297, %v370
    %v374 = vxor.u32 %v373, 2147483648
    %v375 = vmul.f32 %v374, 1.442695
    %v376 = vpow.pop %v375
    %v377 = vadd.f32 %v376, 1.0
    %v378 = vrcp.pop %v377
    %v379 = vmul.f32 1.0, %v378
    %v380 = vtanh.pop %v373
    %v381 = vmul.f32 %v379, %v289
    %383 = vrot.lane.b32.xlu0 %v380, 64
    %v384 = vpop.permute.xlu0 %383
    %v386 = vmul.f32 %v379, %v384
    %388 = vrot.lane.b32.xlu0 %v386, 32
    %v389 = vpop.permute.xlu0 %388
    %v391 = vadd.f32 %v381, %v389
    %v392 = vtanh.pop %v391
    %394 = vrot.lane.b32.xlu0 %v392, 64
    %v395 = vpop.permute.xlu0 %394
    %v397 = vmul.f32 %v379, %v395
    %s398 = scalar_lea.vmem [#allocation4], 16
    %v399 = vld [vmem:[%s398] sm:$0xff]
    %401 = vrot.lane.b32.xlu0 %v397, 32
    %v402 = vpop.permute.xlu0 %401
    %v403 = vsel %vm193, %v402, 0
    %405 = vmatprep.subr.mxu0 0.0
    %406 = vmatpush1.msra.mxu0 %v189
    %407 = vmatprep.subr.mxu0 0.0
    %408 = vmatpush1.msra.mxu0 %v190
    %409 = vmatprep.subr.mxu0 0.0
    %410 = vmatpush1.msra.mxu0 %v191
    %411 = vmatprep.subr.mxu0 0.0
    %412 = vmatpush1.msra.mxu0 %v192
    %413 = vmatprep.subr.mxu0 0.0
    %414 = vmatpush1.msra.mxu0 0.0
    %415 = vmatprep.subr.mxu0 0.0
    %416 = vmatpush1.msra.mxu0 0.0
    %417 = vmatprep.subr.mxu0 0.0
    %418 = vmatpush1.msra.mxu0 0.0
    %419 = vmatprep.subr.mxu0 0.0
    %420 = vmatpush1.msra.mxu0 0.0
    %421 = vmatprep.subr.mxu0 0.0
    %422 = vmatpush1.msra.mxu0 0.0
    %423 = vmatprep.subr.mxu0 0.0
    %424 = vmatpush1.msra.mxu0 0.0
    %425 = vmatprep.subr.mxu0 0.0
    %426 = vmatpush1.msra.mxu0 0.0
    %427 = vmatprep.subr.mxu0 0.0
    %428 = vmatpush1.msra.mxu0 0.0
    %429 = vmatprep.subr.mxu0 0.0
    %430 = vmatpush1.msra.mxu0 0.0
    %431 = vmatprep.subr.mxu0 0.0
    %432 = vmatpush1.msra.mxu0 0.0
    %433 = vmatprep.subr.mxu0 0.0
    %434 = vmatpush1.msra.mxu0 0.0
    %435 = vmatprep.subr.mxu0 0.0
    %436 = vmatpush1.msra.mxu0 0.0
    %437 = vmatprep.subr.mxu0 0.0
    %438 = vmatpush1.msra.mxu0 0.0
    %439 = vmatprep.subr.mxu0 0.0
    %440 = vmatpush1.msra.mxu0 0.0
    %441 = vmatprep.subr.mxu0 0.0
    %442 = vmatpush1.msra.mxu0 0.0
    %443 = vmatprep.subr.mxu0 0.0
    %444 = vmatpush1.msra.mxu0 0.0
    %445 = vmatprep.subr.mxu0 0.0
    %446 = vmatpush1.msra.mxu0 0.0
    %447 = vmatprep.subr.mxu0 0.0
    %448 = vmatpush1.msra.mxu0 0.0
    %449 = vmatprep.subr.mxu0 0.0
    %450 = vmatpush1.msra.mxu0 0.0
    %451 = vmatprep.subr.mxu0 0.0
    %452 = vmatpush1.msra.mxu0 0.0
    %453 = vmatprep.subr.mxu0 0.0
    %454 = vmatpush1.msra.mxu0 0.0
    %455 = vmatprep.subr.mxu0 0.0
    %456 = vmatpush1.msra.mxu0 0.0
    %457 = vmatprep.subr.mxu0 0.0
    %458 = vmatpush1.msra.mxu0 0.0
    %459 = vmatprep.subr.mxu0 0.0
    %460 = vmatpush1.msra.mxu0 0.0
    %461 = vmatprep.subr.mxu0 0.0
    %462 = vmatpush1.msra.mxu0 0.0
    %463 = vmatprep.subr.mxu0 0.0
    %464 = vmatpush1.msra.mxu0 0.0
    %465 = vmatprep.subr.mxu0 0.0
    %466 = vmatpush1.msra.mxu0 0.0
    %467 = vmatprep.subr.mxu0 0.0
    %468 = vmatpush1.msra.mxu0 0.0
    %469 = vmatprep.mubr.f32.mxu0 0.0
    %470 = vmatmul.mubr.f32.gmra.mrb[0].mxu0 %v403
    %v471 = vpop.f32.mrb[0].mxu0
    %v472 = vadd.f32 0.0, %v471
    %v473 = vpop.f32.mrb[0].mxu0
    %474 = vdwg.mxu0
    %v475 = vadd.f32 %v399, %v472
    %v476 = vxor.u32 %v475, 2147483648
    %v477 = vmul.f32 %v476, 1.442695
    %v478 = vpow.pop %v477
    %v479 = vadd.f32 %v478, 1.0
    %v480 = vrcp.pop %v479
    %v481 = vmul.f32 1.0, %v480
    %v482 = vtanh.pop %v475
    %v483 = vmul.f32 %v481, %v391
    %485 = vrot.lane.b32.xlu0 %v482, 64
    %v486 = vpop.permute.xlu0 %485
    %v488 = vmul.f32 %v481, %v486
    %490 = vrot.lane.b32.xlu0 %v488, 32
    %v491 = vpop.permute.xlu0 %490
    %v493 = vadd.f32 %v483, %v491
    %v494 = vtanh.pop %v493
    %496 = vrot.lane.b32.xlu0 %v494, 64
    %v497 = vpop.permute.xlu0 %496
    %v499 = vmul.f32 %v481, %v497
    %s500 = scalar_lea.vmem [#allocation4], 24
    %v501 = vld [vmem:[%s500] sm:$0xff]
    %503 = vrot.lane.b32.xlu0 %v499, 32
    %v504 = vpop.permute.xlu0 %503
    %v505 = vsel %vm193, %v504, 0
    %507 = vmatprep.subr.mxu0 0.0
    %508 = vmatpush1.msra.mxu0 %v189
    %509 = vmatprep.subr.mxu0 0.0
    %510 = vmatpush1.msra.mxu0 %v190
    %511 = vmatprep.subr.mxu0 0.0
    %512 = vmatpush1.msra.mxu0 %v191
    %513 = vmatprep.subr.mxu0 0.0
    %514 = vmatpush1.msra.mxu0 %v192
    %515 = vmatprep.subr.mxu0 0.0
    %516 = vmatpush1.msra.mxu0 0.0
    %517 = vmatprep.subr.mxu0 0.0
    %518 = vmatpush1.msra.mxu0 0.0
    %519 = vmatprep.subr.mxu0 0.0
    %520 = vmatpush1.msra.mxu0 0.0
    %521 = vmatprep.subr.mxu0 0.0
    %522 = vmatpush1.msra.mxu0 0.0
    %523 = vmatprep.subr.mxu0 0.0
    %524 = vmatpush1.msra.mxu0 0.0
    %525 = vmatprep.subr.mxu0 0.0
    %526 = vmatpush1.msra.mxu0 0.0
    %527 = vmatprep.subr.mxu0 0.0
    %528 = vmatpush1.msra.mxu0 0.0
    %529 = vmatprep.subr.mxu0 0.0
    %530 = vmatpush1.msra.mxu0 0.0
    %531 = vmatprep.subr.mxu0 0.0
    %532 = vmatpush1.msra.mxu0 0.0
    %533 = vmatprep.subr.mxu0 0.0
    %534 = vmatpush1.msra.mxu0 0.0
    %535 = vmatprep.subr.mxu0 0.0
    %536 = vmatpush1.msra.mxu0 0.0
    %537 = vmatprep.subr.mxu0 0.0
    %538 = vmatpush1.msra.mxu0 0.0
    %539 = vmatprep.subr.mxu0 0.0
    %540 = vmatpush1.msra.mxu0 0.0
    %541 = vmatprep.subr.mxu0 0.0
    %542 = vmatpush1.msra.mxu0 0.0
    %543 = vmatprep.subr.mxu0 0.0
    %544 = vmatpush1.msra.mxu0 0.0
    %545 = vmatprep.subr.mxu0 0.0
    %546 = vmatpush1.msra.mxu0 0.0
    %547 = vmatprep.subr.mxu0 0.0
    %548 = vmatpush1.msra.mxu0 0.0
    %549 = vmatprep.subr.mxu0 0.0
    %550 = vmatpush1.msra.mxu0 0.0
    %551 = vmatprep.subr.mxu0 0.0
    %552 = vmatpush1.msra.mxu0 0.0
    %553 = vmatprep.subr.mxu0 0.0
    %554 = vmatpush1.msra.mxu0 0.0
    %555 = vmatprep.subr.mxu0 0.0
    %556 = vmatpush1.msra.mxu0 0.0
    %557 = vmatprep.subr.mxu0 0.0
    %558 = vmatpush1.msra.mxu0 0.0
    %559 = vmatprep.subr.mxu0 0.0
    %560 = vmatpush1.msra.mxu0 0.0
    %561 = vmatprep.subr.mxu0 0.0
    %562 = vmatpush1.msra.mxu0 0.0
    %563 = vmatprep.subr.mxu0 0.0
    %564 = vmatpush1.msra.mxu0 0.0
    %565 = vmatprep.subr.mxu0 0.0
    %566 = vmatpush1.msra.mxu0 0.0
    %567 = vmatprep.subr.mxu0 0.0
    %568 = vmatpush1.msra.mxu0 0.0
    %569 = vmatprep.subr.mxu0 0.0
    %570 = vmatpush1.msra.mxu0 0.0
    %571 = vmatprep.mubr.f32.mxu0 0.0
    %572 = vmatmul.mubr.f32.gmra.mrb[0].mxu0 %v505
    %v573 = vpop.f32.mrb[0].mxu0
    %v574 = vadd.f32 0.0, %v573
    %v575 = vpop.f32.mrb[0].mxu0
    %576 = vdwg.mxu0
    %v577 = vadd.f32 %v501, %v574
    %v578 = vxor.u32 %v577, 2147483648
    %v579 = vmul.f32 %v578, 1.442695
    %v580 = vpow.pop %v579
    %v581 = vadd.f32 %v580, 1.0
    %v582 = vrcp.pop %v581
    %v583 = vmul.f32 1.0, %v582
    %v584 = vtanh.pop %v577
    %v585 = vmul.f32 %v583, %v493
    %587 = vrot.lane.b32.xlu0 %v584, 64
    %v588 = vpop.permute.xlu0 %587
    %v590 = vmul.f32 %v583, %v588
    %592 = vrot.lane.b32.xlu0 %v590, 32
    %v593 = vpop.permute.xlu0 %592
    %v595 = vadd.f32 %v585, %v593
    %v596 = vtanh.pop %v595
    %598 = vrot.lane.b32.xlu0 %v596, 64
    %v599 = vpop.permute.xlu0 %598
    %v601 = vmul.f32 %v583, %v599
    %s602 = scalar_lea.vmem [#allocation4], 32
    %v603 = vld [vmem:[%s602] sm:$0xff]
    %605 = vrot.lane.b32.xlu0 %v601, 32
    %v606 = vpop.permute.xlu0 %605
    %v607 = vsel %vm193, %v606, 0
    %609 = vmatprep.subr.mxu0 0.0
    %610 = vmatpush1.msra.mxu0 %v189
    %611 = vmatprep.subr.mxu0 0.0
    %612 = vmatpush1.msra.mxu0 %v190
    %613 = vmatprep.subr.mxu0 0.0
    %614 = vmatpush1.msra.mxu0 %v191
    %615 = vmatprep.subr.mxu0 0.0
    %616 = vmatpush1.msra.mxu0 %v192
    %617 = vmatprep.subr.mxu0 0.0
    %618 = vmatpush1.msra.mxu0 0.0
    %619 = vmatprep.subr.mxu0 0.0
    %620 = vmatpush1.msra.mxu0 0.0
    %621 = vmatprep.subr.mxu0 0.0
    %622 = vmatpush1.msra.mxu0 0.0
    %623 = vmatprep.subr.mxu0 0.0
    %624 = vmatpush1.msra.mxu0 0.0
    %625 = vmatprep.subr.mxu0 0.0
    %626 = vmatpush1.msra.mxu0 0.0
    %627 = vmatprep.subr.mxu0 0.0
    %628 = vmatpush1.msra.mxu0 0.0
    %629 = vmatprep.subr.mxu0 0.0
    %630 = vmatpush1.msra.mxu0 0.0
    %631 = vmatprep.subr.mxu0 0.0
    %632 = vmatpush1.msra.mxu0 0.0
    %633 = vmatprep.subr.mxu0 0.0
    %634 = vmatpush1.msra.mxu0 0.0
    %635 = vmatprep.subr.mxu0 0.0
    %636 = vmatpush1.msra.mxu0 0.0
    %637 = vmatprep.subr.mxu0 0.0
    %638 = vmatpush1.msra.mxu0 0.0
    %639 = vmatprep.subr.mxu0 0.0
    %640 = vmatpush1.msra.mxu0 0.0
    %641 = vmatprep.subr.mxu0 0.0
    %642 = vmatpush1.msra.mxu0 0.0
    %643 = vmatprep.subr.mxu0 0.0
    %644 = vmatpush1.msra.mxu0 0.0
    %645 = vmatprep.subr.mxu0 0.0
    %646 = vmatpush1.msra.mxu0 0.0
    %647 = vmatprep.subr.mxu0 0.0
    %648 = vmatpush1.msra.mxu0 0.0
    %649 = vmatprep.subr.mxu0 0.0
    %650 = vmatpush1.msra.mxu0 0.0
    %651 = vmatprep.subr.mxu0 0.0
    %652 = vmatpush1.msra.mxu0 0.0
    %653 = vmatprep.subr.mxu0 0.0
    %654 = vmatpush1.msra.mxu0 0.0
    %655 = vmatprep.subr.mxu0 0.0
    %656 = vmatpush1.msra.mxu0 0.0
    %657 = vmatprep.subr.mxu0 0.0
    %658 = vmatpush1.msra.mxu0 0.0
    %659 = vmatprep.subr.mxu0 0.0
    %660 = vmatpush1.msra.mxu0 0.0
    %661 = vmatprep.subr.mxu0 0.0
    %662 = vmatpush1.msra.mxu0 0.0
    %663 = vmatprep.subr.mxu0 0.0
    %664 = vmatpush1.msra.mxu0 0.0
    %665 = vmatprep.subr.mxu0 0.0
    %666 = vmatpush1.msra.mxu0 0.0
    %667 = vmatprep.subr.mxu0 0.0
    %668 = vmatpush1.msra.mxu0 0.0
    %669 = vmatprep.subr.mxu0 0.0
    %670 = vmatpush1.msra.mxu0 0.0
    %671 = vmatprep.subr.mxu0 0.0
    %672 = vmatpush1.msra.mxu0 0.0
    %673 = vmatprep.mubr.f32.mxu0 0.0
    %674 = vmatmul.mubr.f32.gmra.mrb[0].mxu0 %v607
    %v675 = vpop.f32.mrb[0].mxu0
    %v676 = vadd.f32 0.0, %v675
    %v677 = vpop.f32.mrb[0].mxu0
    %678 = vdwg.mxu0
    %v679 = vadd.f32 %v603, %v676
    %v680 = vxor.u32 %v679, 2147483648
    %v681 = vmul.f32 %v680, 1.442695
    %v682 = vpow.pop %v681
    %v683 = vadd.f32 %v682, 1.0
    %v684 = vrcp.pop %v683
    %v685 = vmul.f32 1.0, %v684
    %v686 = vtanh.pop %v679
    %v687 = vmul.f32 %v685, %v595
    %689 = vrot.lane.b32.xlu0 %v686, 64
    %v690 = vpop.permute.xlu0 %689
    %v692 = vmul.f32 %v685, %v690
    %694 = vrot.lane.b32.xlu0 %v692, 32
    %v695 = vpop.permute.xlu0 %694
    %v697 = vadd.f32 %v687, %v695
    %v698 = vtanh.pop %v697
    %700 = vrot.lane.b32.xlu0 %v698, 64
    %v701 = vpop.permute.xlu0 %700
    %v703 = vmul.f32 %v685, %v701
    %s704 = scalar_lea.vmem [#allocation4], 40
    %v705 = vld [vmem:[%s704] sm:$0xff]
    %707 = vrot.lane.b32.xlu0 %v703, 32
    %v708 = vpop.permute.xlu0 %707
    %v709 = vsel %vm193, %v708, 0
    %711 = vmatprep.subr.mxu0 0.0
    %712 = vmatpush1.msra.mxu0 %v189
    %713 = vmatprep.subr.mxu0 0.0
    %714 = vmatpush1.msra.mxu0 %v190
    %715 = vmatprep.subr.mxu0 0.0
    %716 = vmatpush1.msra.mxu0 %v191
    %717 = vmatprep.subr.mxu0 0.0
    %718 = vmatpush1.msra.mxu0 %v192
    %719 = vmatprep.subr.mxu0 0.0
    %720 = vmatpush1.msra.mxu0 0.0
    %721 = vmatprep.subr.mxu0 0.0
    %722 = vmatpush1.msra.mxu0 0.0
    %723 = vmatprep.subr.mxu0 0.0
    %724 = vmatpush1.msra.mxu0 0.0
    %725 = vmatprep.subr.mxu0 0.0
    %726 = vmatpush1.msra.mxu0 0.0
    %727 = vmatprep.subr.mxu0 0.0
    %728 = vmatpush1.msra.mxu0 0.0
    %729 = vmatprep.subr.mxu0 0.0
    %730 = vmatpush1.msra.mxu0 0.0
    %731 = vmatprep.subr.mxu0 0.0
    %732 = vmatpush1.msra.mxu0 0.0
    %733 = vmatprep.subr.mxu0 0.0
    %734 = vmatpush1.msra.mxu0 0.0
    %735 = vmatprep.subr.mxu0 0.0
    %736 = vmatpush1.msra.mxu0 0.0
    %737 = vmatprep.subr.mxu0 0.0
    %738 = vmatpush1.msra.mxu0 0.0
    %739 = vmatprep.subr.mxu0 0.0
    %740 = vmatpush1.msra.mxu0 0.0
    %741 = vmatprep.subr.mxu0 0.0
    %742 = vmatpush1.msra.mxu0 0.0
    %743 = vmatprep.subr.mxu0 0.0
    %744 = vmatpush1.msra.mxu0 0.0
    %745 = vmatprep.subr.mxu0 0.0
    %746 = vmatpush1.msra.mxu0 0.0
    %747 = vmatprep.subr.mxu0 0.0
    %748 = vmatpush1.msra.mxu0 0.0
    %749 = vmatprep.subr.mxu0 0.0
    %750 = vmatpush1.msra.mxu0 0.0
    %751 = vmatprep.subr.mxu0 0.0
    %752 = vmatpush1.msra.mxu0 0.0
    %753 = vmatprep.subr.mxu0 0.0
    %754 = vmatpush1.msra.mxu0 0.0
    %755 = vmatprep.subr.mxu0 0.0
    %756 = vmatpush1.msra.mxu0 0.0
    %757 = vmatprep.subr.mxu0 0.0
    %758 = vmatpush1.msra.mxu0 0.0
    %759 = vmatprep.subr.mxu0 0.0
    %760 = vmatpush1.msra.mxu0 0.0
    %761 = vmatprep.subr.mxu0 0.0
    %762 = vmatpush1.msra.mxu0 0.0
    %763 = vmatprep.subr.mxu0 0.0
    %764 = vmatpush1.msra.mxu0 0.0
    %765 = vmatprep.subr.mxu0 0.0
    %766 = vmatpush1.msra.mxu0 0.0
    %767 = vmatprep.subr.mxu0 0.0
    %768 = vmatpush1.msra.mxu0 0.0
    %769 = vmatprep.subr.mxu0 0.0
    %770 = vmatpush1.msra.mxu0 0.0
    %771 = vmatprep.subr.mxu0 0.0
    %772 = vmatpush1.msra.mxu0 0.0
    %773 = vmatprep.subr.mxu0 0.0
    %774 = vmatpush1.msra.mxu0 0.0
    %775 = vmatprep.mubr.f32.mxu0 0.0
    %776 = vmatmul.mubr.f32.gmra.mrb[0].mxu0 %v709
    %v777 = vpop.f32.mrb[0].mxu0
    %v778 = vadd.f32 0.0, %v777
    %v779 = vpop.f32.mrb[0].mxu0
    %780 = vdwg.mxu0
    %v781 = vadd.f32 %v705, %v778
    %v782 = vxor.u32 %v781, 2147483648
    %v783 = vmul.f32 %v782, 1.442695
    %v784 = vpow.pop %v783
    %v785 = vadd.f32 %v784, 1.0
    %v786 = vrcp.pop %v785
    %v787 = vmul.f32 1.0, %v786
    %v788 = vtanh.pop %v781
    %v789 = vmul.f32 %v787, %v697
    %791 = vrot.lane.b32.xlu0 %v788, 64
    %v792 = vpop.permute.xlu0 %791
    %v794 = vmul.f32 %v787, %v792
    %796 = vrot.lane.b32.xlu0 %v794, 32
    %v797 = vpop.permute.xlu0 %796
    %v799 = vadd.f32 %v789, %v797
    %v800 = vtanh.pop %v799
    %802 = vrot.lane.b32.xlu0 %v800, 64
    %v803 = vpop.permute.xlu0 %802
    %v805 = vmul.f32 %v787, %v803
    %s806 = scalar_lea.vmem [#allocation4], 48
    %v807 = vld [vmem:[%s806] sm:$0xff]
    %809 = vrot.lane.b32.xlu0 %v805, 32
    %v810 = vpop.permute.xlu0 %809
    %v811 = vsel %vm193, %v810, 0
    %813 = vmatprep.subr.mxu0 0.0
    %814 = vmatpush1.msra.mxu0 %v189
    %815 = vmatprep.subr.mxu0 0.0
    %816 = vmatpush1.msra.mxu0 %v190
    %817 = vmatprep.subr.mxu0 0.0
    %818 = vmatpush1.msra.mxu0 %v191
    %819 = vmatprep.subr.mxu0 0.0
    %820 = vmatpush1.msra.mxu0 %v192
    %821 = vmatprep.subr.mxu0 0.0
    %822 = vmatpush1.msra.mxu0 0.0
    %823 = vmatprep.subr.mxu0 0.0
    %824 = vmatpush1.msra.mxu0 0.0
    %825 = vmatprep.subr.mxu0 0.0
    %826 = vmatpush1.msra.mxu0 0.0
    %827 = vmatprep.subr.mxu0 0.0
    %828 = vmatpush1.msra.mxu0 0.0
    %829 = vmatprep.subr.mxu0 0.0
    %830 = vmatpush1.msra.mxu0 0.0
    %831 = vmatprep.subr.mxu0 0.0
    %832 = vmatpush1.msra.mxu0 0.0
    %833 = vmatprep.subr.mxu0 0.0
    %834 = vmatpush1.msra.mxu0 0.0
    %835 = vmatprep.subr.mxu0 0.0
    %836 = vmatpush1.msra.mxu0 0.0
    %837 = vmatprep.subr.mxu0 0.0
    %838 = vmatpush1.msra.mxu0 0.0
    %839 = vmatprep.subr.mxu0 0.0
    %840 = vmatpush1.msra.mxu0 0.0
    %841 = vmatprep.subr.mxu0 0.0
    %842 = vmatpush1.msra.mxu0 0.0
    %843 = vmatprep.subr.mxu0 0.0
    %844 = vmatpush1.msra.mxu0 0.0
    %845 = vmatprep.subr.mxu0 0.0
    %846 = vmatpush1.msra.mxu0 0.0
    %847 = vmatprep.subr.mxu0 0.0
    %848 = vmatpush1.msra.mxu0 0.0
    %849 = vmatprep.subr.mxu0 0.0
    %850 = vmatpush1.msra.mxu0 0.0
    %851 = vmatprep.subr.mxu0 0.0
    %852 = vmatpush1.msra.mxu0 0.0
    %853 = vmatprep.subr.mxu0 0.0
    %854 = vmatpush1.msra.mxu0 0.0
    %855 = vmatprep.subr.mxu0 0.0
    %856 = vmatpush1.msra.mxu0 0.0
    %857 = vmatprep.subr.mxu0 0.0
    %858 = vmatpush1.msra.mxu0 0.0
    %859 = vmatprep.subr.mxu0 0.0
    %860 = vmatpush1.msra.mxu0 0.0
    %861 = vmatprep.subr.mxu0 0.0
    %862 = vmatpush1.msra.mxu0 0.0
    %863 = vmatprep.subr.mxu0 0.0
    %864 = vmatpush1.msra.mxu0 0.0
    %865 = vmatprep.subr.mxu0 0.0
    %866 = vmatpush1.msra.mxu0 0.0
    %867 = vmatprep.subr.mxu0 0.0
    %868 = vmatpush1.msra.mxu0 0.0
    %869 = vmatprep.subr.mxu0 0.0
    %870 = vmatpush1.msra.mxu0 0.0
    %871 = vmatprep.subr.mxu0 0.0
    %872 = vmatpush1.msra.mxu0 0.0
    %873 = vmatprep.subr.mxu0 0.0
    %874 = vmatpush1.msra.mxu0 0.0
    %875 = vmatprep.subr.mxu0 0.0
    %876 = vmatpush1.msra.mxu0 0.0
    %877 = vmatprep.mubr.f32.mxu0 0.0
    %878 = vmatmul.mubr.f32.gmra.mrb[0].mxu0 %v811
    %v879 = vpop.f32.mrb[0].mxu0
    %v880 = vadd.f32 0.0, %v879
    %v881 = vpop.f32.mrb[0].mxu0
    %882 = vdwg.mxu0
    %v883 = vadd.f32 %v807, %v880
    %v884 = vxor.u32 %v883, 2147483648
    %v885 = vmul.f32 %v884, 1.442695
    %v886 = vpow.pop %v885
    %v887 = vadd.f32 %v886, 1.0
    %v888 = vrcp.pop %v887
    %v889 = vmul.f32 1.0, %v888
    %v890 = vtanh.pop %v883
    %v891 = vmul.f32 %v889, %v799
    %893 = vrot.lane.b32.xlu0 %v890, 64
    %v894 = vpop.permute.xlu0 %893
    %v896 = vmul.f32 %v889, %v894
    %898 = vrot.lane.b32.xlu0 %v896, 32
    %v899 = vpop.permute.xlu0 %898
    %v901 = vadd.f32 %v891, %v899
    %v902 = vtanh.pop %v901
    %904 = vrot.lane.b32.xlu0 %v902, 64
    %v905 = vpop.permute.xlu0 %904
    %v907 = vmul.f32 %v889, %v905
    %s908 = scalar_lea.vmem [#allocation4], 56
    %v909 = vld [vmem:[%s908] sm:$0xff]
    %911 = vrot.lane.b32.xlu0 %v907, 32
    %v912 = vpop.permute.xlu0 %911
    %v913 = vsel %vm193, %v912, 0
    %915 = vmatprep.subr.mxu0 0.0
    %916 = vmatpush1.msra.mxu0 %v189
    %917 = vmatprep.subr.mxu0 0.0
    %918 = vmatpush1.msra.mxu0 %v190
    %919 = vmatprep.subr.mxu0 0.0
    %920 = vmatpush1.msra.mxu0 %v191
    %921 = vmatprep.subr.mxu0 0.0
    %922 = vmatpush1.msra.mxu0 %v192
    %923 = vmatprep.subr.mxu0 0.0
    %924 = vmatpush1.msra.mxu0 0.0
    %925 = vmatprep.subr.mxu0 0.0
    %926 = vmatpush1.msra.mxu0 0.0
    %927 = vmatprep.subr.mxu0 0.0
    %928 = vmatpush1.msra.mxu0 0.0
    %929 = vmatprep.subr.mxu0 0.0
    %930 = vmatpush1.msra.mxu0 0.0
    %931 = vmatprep.subr.mxu0 0.0
    %932 = vmatpush1.msra.mxu0 0.0
    %933 = vmatprep.subr.mxu0 0.0
    %934 = vmatpush1.msra.mxu0 0.0
    %935 = vmatprep.subr.mxu0 0.0
    %936 = vmatpush1.msra.mxu0 0.0
    %937 = vmatprep.subr.mxu0 0.0
    %938 = vmatpush1.msra.mxu0 0.0
    %939 = vmatprep.subr.mxu0 0.0
    %940 = vmatpush1.msra.mxu0 0.0
    %941 = vmatprep.subr.mxu0 0.0
    %942 = vmatpush1.msra.mxu0 0.0
    %943 = vmatprep.subr.mxu0 0.0
    %944 = vmatpush1.msra.mxu0 0.0
    %945 = vmatprep.subr.mxu0 0.0
    %946 = vmatpush1.msra.mxu0 0.0
    %947 = vmatprep.subr.mxu0 0.0
    %948 = vmatpush1.msra.mxu0 0.0
    %949 = vmatprep.subr.mxu0 0.0
    %950 = vmatpush1.msra.mxu0 0.0
    %951 = vmatprep.subr.mxu0 0.0
    %952 = vmatpush1.msra.mxu0 0.0
    %953 = vmatprep.subr.mxu0 0.0
    %954 = vmatpush1.msra.mxu0 0.0
    %955 = vmatprep.subr.mxu0 0.0
    %956 = vmatpush1.msra.mxu0 0.0
    %957 = vmatprep.subr.mxu0 0.0
    %958 = vmatpush1.msra.mxu0 0.0
    %959 = vmatprep.subr.mxu0 0.0
    %960 = vmatpush1.msra.mxu0 0.0
    %961 = vmatprep.subr.mxu0 0.0
    %962 = vmatpush1.msra.mxu0 0.0
    %963 = vmatprep.subr.mxu0 0.0
    %964 = vmatpush1.msra.mxu0 0.0
    %965 = vmatprep.subr.mxu0 0.0
    %966 = vmatpush1.msra.mxu0 0.0
    %967 = vmatprep.subr.mxu0 0.0
    %968 = vmatpush1.msra.mxu0 0.0
    %969 = vmatprep.subr.mxu0 0.0
    %970 = vmatpush1.msra.mxu0 0.0
    %971 = vmatprep.subr.mxu0 0.0
    %972 = vmatpush1.msra.mxu0 0.0
    %973 = vmatprep.subr.mxu0 0.0
    %974 = vmatpush1.msra.mxu0 0.0
    %975 = vmatprep.subr.mxu0 0.0
    %976 = vmatpush1.msra.mxu0 0.0
    %977 = vmatprep.subr.mxu0 0.0
    %978 = vmatpush1.msra.mxu0 0.0
    %979 = vmatprep.mubr.f32.mxu0 0.0
    %980 = vmatmul.mubr.f32.gmra.mrb[0].mxu0 %v913
    %v981 = vpop.f32.mrb[0].mxu0
    %v982 = vadd.f32 0.0, %v981
    %v983 = vpop.f32.mrb[0].mxu0
    %984 = vdwg.mxu0
    %v985 = vadd.f32 %v909, %v982
    %v986 = vxor.u32 %v985, 2147483648
    %v987 = vmul.f32 %v986, 1.442695
    %v988 = vpow.pop %v987
    %v989 = vadd.f32 %v988, 1.0
    %v990 = vrcp.pop %v989
    %v991 = vmul.f32 1.0, %v990
    %v992 = vtanh.pop %v985
    %v993 = vmul.f32 %v991, %v901
    %995 = vrot.lane.b32.xlu0 %v992, 64
    %v996 = vpop.permute.xlu0 %995
    %v998 = vmul.f32 %v991, %v996
    %1000 = vrot.lane.b32.xlu0 %v998, 32
    %v1001 = vpop.permute.xlu0 %1000
    %v1003 = vadd.f32 %v993, %v1001
    %v1004 = vtanh.pop %v1003
    %1006 = vrot.lane.b32.xlu0 %v1004, 64
    %v1007 = vpop.permute.xlu0 %1006
    %v1009 = vmul.f32 %v991, %v1007
    %1011 = vrot.lane.b32.xlu0 %v1009, 32
    %v1012 = vpop.permute.xlu0 %1011
    %1014 = vst.msk [vmem:[#allocation2] sm:$0xff] %vm193, %v1012
    %1016 = vrot.lane.b32.xlu0 %v1003, 96
    %v1017 = vpop.permute.xlu0 %1016
    %1019 = vst.msk [vmem:[#allocation3] sm:$0xff] %vm193, %v1017
    // Predicated region
    $region30: #{tpu_custom_call.1} parent=1 // pred_check
      %p1020 = pneg %p24
    $region31: #{tpu_custom_call.1} parent=1 // pred_check_branch
      %1022 = sbr.rel (%p1020) target = $region33
    $region32: #{tpu_custom_call.1} parent=1 // pred_region
      %v1023 = vld [vmem:[%s4] sm:$0xff]
      %v1024 = vld [vmem:[%s4 + $0x8] sm:$0xff]
      %v1025 = vld [vmem:[%s4 + $0x10] sm:$0xff]
      %v1026 = vld [vmem:[%s4 + $0x18] sm:$0xff]
      %v1027 = vld [vmem:[%s5] sm:$0x1]
      %v1029 = vlaneseq
      %v1030 = vshrl.u32 %v1029, 7
      %v1031 = vsub.s32 0, %v1030
      %v1032 = vrot.slane %v1027, %v1031
      %v1034 = vsel %vm193, %v1012, 0
      %1036 = vmatprep.subr.mxu0 0.0
      %1037 = vmatpush1.msra.mxu0 %v1023
      %1038 = vmatprep.subr.mxu0 0.0
      %1039 = vmatpush1.msra.mxu0 %v1024
      %1040 = vmatprep.subr.mxu0 0.0
      %1041 = vmatpush1.msra.mxu0 %v1025
      %1042 = vmatprep.subr.mxu0 0.0
      %1043 = vmatpush1.msra.mxu0 %v1026
      %1044 = vmatprep.subr.mxu0 0.0
      %1045 = vmatpush1.msra.mxu0 0.0
      %1046 = vmatprep.subr.mxu0 0.0
      %1047 = vmatpush1.msra.mxu0 0.0
      %1048 = vmatprep.subr.mxu0 0.0
      %1049 = vmatpush1.msra.mxu0 0.0
      %1050 = vmatprep.subr.mxu0 0.0
      %1051 = vmatpush1.msra.mxu0 0.0
      %1052 = vmatprep.subr.mxu0 0.0
      %1053 = vmatpush1.msra.mxu0 0.0
      %1054 = vmatprep.subr.mxu0 0.0
      %1055 = vmatpush1.msra.mxu0 0.0
      %1056 = vmatprep.subr.mxu0 0.0
      %1057 = vmatpush1.msra.mxu0 0.0
      %1058 = vmatprep.subr.mxu0 0.0
      %1059 = vmatpush1.msra.mxu0 0.0
      %1060 = vmatprep.subr.mxu0 0.0
      %1061 = vmatpush1.msra.mxu0 0.0
      %1062 = vmatprep.subr.mxu0 0.0
      %1063 = vmatpush1.msra.mxu0 0.0
      %1064 = vmatprep.subr.mxu0 0.0
      %1065 = vmatpush1.msra.mxu0 0.0
      %1066 = vmatprep.subr.mxu0 0.0
      %1067 = vmatpush1.msra.mxu0 0.0
      %1068 = vmatprep.subr.mxu0 0.0
      %1069 = vmatpush1.msra.mxu0 0.0
      %1070 = vmatprep.subr.mxu0 0.0
      %1071 = vmatpush1.msra.mxu0 0.0
      %1072 = vmatprep.subr.mxu0 0.0
      %1073 = vmatpush1.msra.mxu0 0.0
      %1074 = vmatprep.subr.mxu0 0.0
      %1075 = vmatpush1.msra.mxu0 0.0
      %1076 = vmatprep.subr.mxu0 0.0
      %1077 = vmatpush1.msra.mxu0 0.0
      %1078 = vmatprep.subr.mxu0 0.0
      %1079 = vmatpush1.msra.mxu0 0.0
      %1080 = vmatprep.subr.mxu0 0.0
      %1081 = vmatpush1.msra.mxu0 0.0
      %1082 = vmatprep.subr.mxu0 0.0
      %1083 = vmatpush1.msra.mxu0 0.0
      %1084 = vmatprep.subr.mxu0 0.0
      %1085 = vmatpush1.msra.mxu0 0.0
      %1086 = vmatprep.subr.mxu0 0.0
      %1087 = vmatpush1.msra.mxu0 0.0
      %1088 = vmatprep.subr.mxu0 0.0
      %1089 = vmatpush1.msra.mxu0 0.0
      %1090 = vmatprep.subr.mxu0 0.0
      %1091 = vmatpush1.msra.mxu0 0.0
      %1092 = vmatprep.subr.mxu0 0.0
      %1093 = vmatpush1.msra.mxu0 0.0
      %1094 = vmatprep.subr.mxu0 0.0
      %1095 = vmatpush1.msra.mxu0 0.0
      %1096 = vmatprep.subr.mxu0 0.0
      %1097 = vmatpush1.msra.mxu0 0.0
      %1098 = vmatprep.subr.mxu0 0.0
      %1099 = vmatpush1.msra.mxu0 0.0
      %1100 = vmatprep.mubr.f32.mxu0 0.0
      %1101 = vmatmul.mubr.f32.gmra.mrb[0].mxu0 %v1034
      %v1102 = vpop.f32.mrb[0].mxu0
      %v1103 = vadd.f32 %v1032, %v1102
      %v1104 = vpop.f32.mrb[0].mxu0
      %1105 = vdwg.mxu0
      %1106 = vst [vmem:[#allocation5] sm:$0xff] %v1103
    $region33: #{tpu_custom_call.1} parent=1 // pred_fallthru
      _
    // Predicated region
    $region34: #{tpu_custom_call.1} parent=1 // pred_check
      _
    $region35: #{tpu_custom_call.1} parent=1 // pred_check_branch
      %1108 = sbr.rel (0) target = $region37
    $region36: #{tpu_custom_call.1} parent=1 // pred_region
      %s1110 = ssub.s32 128, 128
      %1111 = vsyncadd [#allocation6], %s1110
      %s1113 = sshll.u32 [#allocation5], 4
      %s1114 = int_to_ptr.vmem [resolvable:$true] %s1113
      %1116 = dma.vmem_to_hbm [thread:$0]  %s1114, 128, %s6, [#allocation6]
    $region37: #{tpu_custom_call.1} parent=1 // pred_fallthru
      _
    // Predicated region
    $region38: #{tpu_custom_call.1} parent=1 // pred_check
      _
    $region39: #{tpu_custom_call.1} parent=1 // pred_check_branch
      %1118 = sbr.rel (0) target = $region41
    $region40: #{tpu_custom_call.1} parent=1 // pred_region
      %1119 = dma.done [#allocation6], 128
    $region41: #{tpu_custom_call.1} parent=1 // pred_fallthru
      _
    %1120 = vsyncpa [#allocation6], 1

</llo_original>
